<compile_context>
chip_gen: v6e
topology: v6e:2x2x1
jax: 0.10.0
libtpu: 0.0.40
codegen_flags: <defaults>
</compile_context>

<pallas_src>
import math

import numpy as np
import jax
import jax.numpy as jnp
from jax.experimental import pallas as pl
from jax.experimental.pallas import tpu as pltpu

# Module hyper-parameters: AVWGCN(node_num=N, dim_in=C_IN, dim_out=C_OUT, cheb_k, embed_dim=D)
N, D, C_IN, C_OUT, CHEB_K = 16, 8, 4, 8, 3
KI = CHEB_K * C_IN            # flattened (k, i) extent = 12
B = 8                         # independent samples (amortizes launch/DMA overhead)
TILE_B = 4                    # samples per grid step
TB_N = TILE_B * N             # rows per grid step = 64

# cst1 lane layout (per-row constants, tiled to TB_N rows):
C1_E = 0                      # [0   : 96 )  E_rows  (E[n,d] repeated for every (k,i))
C1_B = KI * D                 # [96  : 104)  bias_rows
C1_S = 128                    # [128 : 192)  block-diagonal S (128-aligned region)
C1_W = C1_S + TB_N            # total lane width = 192
# cst2 layout: rows [0:96) lanes [0:8) = Wflat ;  rows [96:108) lanes [0:96) = R selector


def precompute_kernel(e_ref, rhs_ref, adjsa_ref, out_ref):
    """One-shot, x-independent: S = attention-weighted supports, bias = E @ bias_pool."""
    E = e_ref[...]                                                          # (N, D)
    # Fused E-rooted matmul:  E @ [E^T | bias_pool]  ->  [logits | bias]
    fused = jnp.dot(E, rhs_ref[...], preferred_element_type=jnp.float32)    # (N, N+C_OUT)
    logits = jnp.maximum(fused[:, :N], 0.0)
    bias = fused[:, N:]

    adj = adjsa_ref[0:N, :]                                                 # (N, N)
    w1t = adjsa_ref[N:2 * N, :]                                             # (N, N)
    w2t = adjsa_ref[2 * N:3 * N, :]                                         # (N, N)

    # supports = softmax(relu(E @ E^T), axis=1)   (exact reciprocal for tolerance)
    logits = logits - jnp.max(logits, axis=1, keepdims=True)
    p = jnp.exp(logits)
    supports = p * pl.reciprocal(jnp.sum(p, axis=1, keepdims=True), approx=False)

    # spatial attention: sigmoid([supports | adj] @ W^T) = sigmoid(supports@W1T + adj@W2T)
    s2 = jax.nn.sigmoid(
        jnp.dot(supports, w1t, preferred_element_type=jnp.float32)
        + jnp.dot(adj, w2t, preferred_element_type=jnp.float32))
    S = s2 * adj + (1.0 - s2) * supports

    out_ref[...] = jnp.concatenate([S, bias], axis=1).astype(out_ref.dtype)


def avwgcn_apply_kernel(x_ref, cst1_ref, cst2_ref, out_ref):
    """Hot path, one batch tile per grid step (rows ordered (b, n))."""
    Xs = x_ref[...]                                       # (TB_N, C_IN)
    e_rows = cst1_ref[:, C1_E:C1_E + KI * D]              # (TB_N, 96)
    b_rows = cst1_ref[:, C1_B:C1_B + C_OUT]               # (TB_N, C_OUT)
    s_bd = cst1_ref[:, C1_S:C1_S + TB_N]                  # (TB_N, TB_N) block-diag S
    wflat = cst2_ref[0:KI * D, 0:C_OUT]                   # (96, C_OUT)

    # Chebyshev propagation applied directly to X (identity term never built):
    #   g0 = X, g1 = S@X, gk = 2*S@g_{k-1} - g_{k-2}
    g = [Xs, jnp.dot(s_bd, Xs, preferred_element_type=jnp.float32)]
    for _ in range(2, CHEB_K):
        g.append(2.0 * jnp.dot(s_bd, g[-1], preferred_element_type=jnp.float32) - g[-2])

    # Lane-repeat fan-out with the k-offset absorbed into per-k selection matmuls
    # (no sub-128 lane concat):  g_rep[bn, (k*C_IN+i)*D + d] = g_k[bn, i]
    g_rep = jnp.dot(g[0], cst2_ref[KI * D:KI * D + C_IN, :],
                    preferred_element_type=jnp.float32)
    for k in range(1, CHEB_K):
        r_k = cst2_ref[KI * D + k * C_IN:KI * D + (k + 1) * C_IN, :]
        g_rep = g_rep + jnp.dot(g[k], r_k, preferred_element_type=jnp.float32)

    # Fused node-adaptive tail for the whole tile: one 96-wide MXU contraction.
    t = g_rep * e_rows
    out_ref[...] = (jnp.dot(t, wflat, preferred_element_type=jnp.float32)
                    + b_rows).astype(out_ref.dtype)


def avwgcn_forward(x, node_embeddings, adj_m, weights_pool, bias_pool, sa_weight):
    batch = x.shape[0]
    assert batch % TILE_B == 0

    # ---- stage 1: one-shot precompute of x-independent S and bias (Pallas) ----
    rhs = jnp.concatenate([node_embeddings.T, bias_pool], axis=1)          # (D, N+C_OUT)
    adjsa = jnp.concatenate(
        [adj_m, sa_weight[:, :N].T, sa_weight[:, N:].T], axis=0)           # (3N, N)
    sbias = pl.pallas_call(
        precompute_kernel,
        out_shape=jax.ShapeDtypeStruct((N, N + C_OUT), jnp.float32),
        grid=(1,),
        in_specs=[pl.BlockSpec((N, D), lambda i: (0, 0)),
                  pl.BlockSpec((D, N + C_OUT), lambda i: (0, 0)),
                  pl.BlockSpec((3 * N, N), lambda i: (0, 0))],
        out_specs=pl.BlockSpec((N, N + C_OUT), lambda i: (0, 0)),
        compiler_params=pltpu.CompilerParams(dimension_semantics=("arbitrary",)),
    )(node_embeddings, rhs, adjsa)
    S = sbias[:, :N]
    bias = sbias[:, N:]

    # ---- x-independent layout plumbing, packed into two constant slabs ----
    e_rows = jnp.tile(jnp.tile(node_embeddings, (1, KI)), (TILE_B, 1))     # (TB_N, 96)
    bias_rows = jnp.tile(bias, (TILE_B, 1))                                # (TB_N, C_OUT)
    s_bd = jnp.kron(jnp.eye(TILE_B, dtype=jnp.float32), S)                 # (TB_N, TB_N)
    pad = jnp.zeros((TB_N, C1_S - (C1_B + C_OUT)), jnp.float32)
    cst1 = jnp.concatenate([e_rows, bias_rows, pad, s_bd], axis=1)         # (TB_N, 192)

    # Wflat rows ordered (k*C_IN + i)*D + d  <-  weights_pool[d, k, i, o]
    wflat = jnp.transpose(weights_pool, (1, 2, 0, 3)).reshape(KI * D, C_OUT)
    r_np = np.zeros((KI, KI * D), np.float32)                              # R[ki, ki*D+d]=1
    for ki in range(KI):
        r_np[ki, ki * D:(ki + 1) * D] = 1.0
    cst2 = jnp.zeros((KI * D + KI, KI * D), jnp.float32)
    cst2 = cst2.at[:KI * D, :C_OUT].set(wflat)
    cst2 = cst2.at[KI * D:, :].set(jnp.asarray(r_np))

    # ---- stage 2: hot kernel, grid over batch tiles ("parallel" -> megacore) ----
    x2d = x.reshape(batch * N, C_IN)                                       # rows (b, n)
    out_flat = pl.pallas_call(
        avwgcn_apply_kernel,
        out_shape=jax.ShapeDtypeStruct((batch * N, C_OUT), jnp.float32),
        grid=(batch // TILE_B,),
        in_specs=[pl.BlockSpec((TB_N, C_IN), lambda t: (t, 0)),
                  pl.BlockSpec((TB_N, C1_W), lambda t: (0, 0)),
                  pl.BlockSpec((KI * D + KI, KI * D), lambda t: (0, 0))],
        out_specs=pl.BlockSpec((TB_N, C_OUT), lambda t: (t, 0)),
        compiler_params=pltpu.CompilerParams(dimension_semantics=("parallel",)),
    )(x2d, cst1, cst2)
    return out_flat.reshape(batch, N, C_OUT)


def ref_forward(x, E, adj, wpool, bpool, sa_w):
    """Pure-JAX reference replicating the PyTorch forward exactly."""
    n = E.shape[0]
    supports = jax.nn.softmax(jnp.maximum(E @ E.T, 0.0), axis=1)
    z = jnp.concatenate([supports, adj], axis=1)          # (N, 2N)
    s2 = jax.nn.sigmoid(z @ sa_w.T)                       # 1x1 conv == matmul
    supports = s2 * adj + (1.0 - s2) * supports
    support_set = [jnp.eye(n, dtype=jnp.float32), supports]
    for _ in range(2, CHEB_K):
        support_set.append(2.0 * supports @ support_set[-1] - support_set[-2])
    Smat = jnp.stack(support_set, axis=0)                 # (K, N, N)
    weights = jnp.einsum('nd,dkio->nkio', E, wpool)       # (N, K, C_in, C_out)
    bias = E @ bpool                                      # (N, C_out)
    x_g = jnp.einsum('knm,bmc->bknc', Smat, x)            # (B, K, N, C_in)
    x_g = x_g.transpose(0, 2, 1, 3)                       # (B, N, K, C_in)
    return jnp.einsum('bnki,nkio->bno', x_g, weights) + bias


if __name__ == "__main__":
    key = jax.random.PRNGKey(0)
    k1, k2, k3, k4, k5, k6 = jax.random.split(key, 6)

    x = jax.random.normal(k1, (B, N, C_IN), jnp.float32)
    node_embeddings = jax.random.normal(k2, (N, D), jnp.float32)
    adj_m = jax.nn.softmax(jax.random.normal(k3, (N, N), jnp.float32), axis=1)

    # Deterministic xavier-style parameter init (shapes from AVWGCN.__init__)
    bw = math.sqrt(6.0 / (CHEB_K * C_IN * C_OUT + D * C_IN * C_OUT))
    weights_pool = jax.random.uniform(k4, (D, CHEB_K, C_IN, C_OUT), jnp.float32, -bw, bw)
    bb = math.sqrt(6.0 / (D + C_OUT))
    bias_pool = jax.random.uniform(k5, (D, C_OUT), jnp.float32, -bb, bb)
    sa_std = math.sqrt(2.0 / (2 * N + N))
    sa_weight = sa_std * jax.random.normal(k6, (N, 2 * N), jnp.float32)

    fwd = jax.jit(avwgcn_forward)
    out = fwd(x, node_embeddings, adj_m, weights_pool, bias_pool, sa_weight)
    out = jax.block_until_ready(out)

    ref = ref_forward(x, node_embeddings, adj_m, weights_pool, bias_pool, sa_weight)
    max_err = float(jnp.max(jnp.abs(out - ref)))
    assert jnp.allclose(out, ref, atol=1e-4, rtol=1e-4), f"max_err={max_err}"
    print("KERNEL_OK")
</pallas_src>

<mosaic_0001>
module attributes {stable_mosaic.version = 11 : i64} {
  func.func @precompute_kernel(%arg0: i32, %arg1: memref<16x8xf32, #tpu.memory_space<vmem>>, %arg2: memref<8x24xf32, #tpu.memory_space<vmem>>, %arg3: memref<48x16xf32, #tpu.memory_space<vmem>>, %arg4: memref<16x24xf32, #tpu.memory_space<vmem>>) attributes {dimension_semantics = [#tpu.dimension_semantics<arbitrary>], iteration_bounds = array<i64: 1>, scalar_prefetch = 0 : i64, scratch_operands = 0 : i64, tpu.core_type = #tpu.core_type<tc>, window_params = [{pipeline_mode = #tpu.pipeline_mode<synchronous>, transform_indices = @transform_0, window_bounds = array<i64: 16, 8>}, {pipeline_mode = #tpu.pipeline_mode<synchronous>, transform_indices = @transform_1, window_bounds = array<i64: 8, 24>}, {pipeline_mode = #tpu.pipeline_mode<synchronous>, transform_indices = @transform_2, window_bounds = array<i64: 48, 16>}, {pipeline_mode = #tpu.pipeline_mode<synchronous>, transform_indices = @transform_3, window_bounds = array<i64: 16, 24>}]} {
    %c0 = arith.constant 0 : index
    %c0_0 = arith.constant 0 : index
    %0 = vector.load %arg1[%c0, %c0_0] : memref<16x8xf32, #tpu.memory_space<vmem>>, vector<16x8xf32>
    %c0_1 = arith.constant 0 : index
    %c0_2 = arith.constant 0 : index
    %1 = vector.load %arg2[%c0_1, %c0_2] : memref<8x24xf32, #tpu.memory_space<vmem>>, vector<8x24xf32>
    %cst = arith.constant dense<0.000000e+00> : vector<16x24xf32>
    %2 = tpu.matmul %0, %1, %cst {dimension_numbers = #tpu.dot_dimension_numbers<[1], [0], [0], [1], [0, 0, 1, 1], [], []>} : vector<16x8xf32>, vector<8x24xf32>, vector<16x24xf32> -> vector<16x24xf32>
    %3 = vector.extract_strided_slice %2 {offsets = [0, 0], sizes = [16, 16], strides = [1, 1]} : vector<16x24xf32> to vector<16x16xf32>
    %cst_3 = arith.constant 0.000000e+00 : f32
    %4 = vector.broadcast %cst_3 : f32 to vector<16x16xf32>
    %5 = arith.maximumf %3, %4 : vector<16x16xf32>
    %6 = vector.extract_strided_slice %2 {offsets = [0, 16], sizes = [16, 8], strides = [1, 1]} : vector<16x24xf32> to vector<16x8xf32>
    %c0_4 = arith.constant 0 : index
    %c0_5 = arith.constant 0 : index
    %7 = vector.load %arg3[%c0_4, %c0_5] : memref<48x16xf32, #tpu.memory_space<vmem>>, vector<16x16xf32>
    %c16 = arith.constant 16 : index
    %c0_6 = arith.constant 0 : index
    %8 = vector.load %arg3[%c16, %c0_6] : memref<48x16xf32, #tpu.memory_space<vmem>>, vector<16x16xf32>
    %c32 = arith.constant 32 : index
    %c0_7 = arith.constant 0 : index
    %9 = vector.load %arg3[%c32, %c0_7] : memref<48x16xf32, #tpu.memory_space<vmem>>, vector<16x16xf32>
    %cst_8 = arith.constant dense<0xFF800000> : vector<16xf32>
    %10 = vector.multi_reduction <maximumf>, %5, %cst_8 [1] : vector<16x16xf32> to vector<16xf32>
    %11 = vector.shape_cast %10 : vector<16xf32> to vector<16x1xf32>
    %12 = vector.broadcast %11 : vector<16x1xf32> to vector<16x16xf32>
    %13 = arith.subf %5, %12 : vector<16x16xf32>
    %14 = math.exp %13 : vector<16x16xf32>
    %cst_9 = arith.constant dense<0.000000e+00> : vector<16xf32>
    %15 = vector.multi_reduction <add>, %14, %cst_9 [1] : vector<16x16xf32> to vector<16xf32>
    %16 = vector.shape_cast %15 : vector<16xf32> to vector<16x1xf32>
    %17 = tpu.reciprocal %16 : vector<16x1xf32> -> vector<16x1xf32>
    %18 = vector.broadcast %17 : vector<16x1xf32> to vector<16x16xf32>
    %19 = arith.mulf %14, %18 : vector<16x16xf32>
    %cst_10 = arith.constant dense<0.000000e+00> : vector<16x16xf32>
    %20 = tpu.matmul %19, %8, %cst_10 {dimension_numbers = #tpu.dot_dimension_numbers<[1], [0], [0], [1], [0, 0, 1, 1], [], []>} : vector<16x16xf32>, vector<16x16xf32>, vector<16x16xf32> -> vector<16x16xf32>
    %cst_11 = arith.constant dense<0.000000e+00> : vector<16x16xf32>
    %21 = tpu.matmul %7, %9, %cst_11 {dimension_numbers = #tpu.dot_dimension_numbers<[1], [0], [0], [1], [0, 0, 1, 1], [], []>} : vector<16x16xf32>, vector<16x16xf32>, vector<16x16xf32> -> vector<16x16xf32>
    %22 = arith.addf %20, %21 : vector<16x16xf32>
    %23 = arith.negf %22 : vector<16x16xf32>
    %24 = math.exp %23 : vector<16x16xf32>
    %cst_12 = arith.constant 1.000000e+00 : f32
    %25 = vector.broadcast %cst_12 : f32 to vector<16x16xf32>
    %26 = arith.addf %25, %24 : vector<16x16xf32>
    %27 = arith.divf %25, %26 : vector<16x16xf32>
    %28 = arith.mulf %27, %7 : vector<16x16xf32>
    %cst_13 = arith.constant 1.000000e+00 : f32
    %29 = vector.broadcast %cst_13 : f32 to vector<16x16xf32>
    %30 = arith.subf %29, %27 : vector<16x16xf32>
    %31 = arith.mulf %30, %19 : vector<16x16xf32>
    %32 = arith.addf %28, %31 : vector<16x16xf32>
    %33 = tpu.concatenate %32, %6 in 1 : vector<16x16xf32>, vector<16x8xf32> -> vector<16x24xf32>
    %c0_14 = arith.constant 0 : index
    %c0_15 = arith.constant 0 : index
    %34 = vector.load %arg4[%c0_14, %c0_15] : memref<16x24xf32, #tpu.memory_space<vmem>>, vector<16x24xf32>
    tpu.vector_store %arg4[%c0_14, %c0_15], %33 {strides = array<i32>} : memref<16x24xf32, #tpu.memory_space<vmem>>, vector<16x24xf32>,
    return
  }
  func.func @transform_0(%arg0: i32) -> (i32, i32) {
    %c0_i32 = arith.constant 0 : i32
    %c0_i32_0 = arith.constant 0 : i32
    %c0_i32_1 = arith.constant 0 : i32
    return %c0_i32, %c0_i32_0 : i32, i32
  }
  func.func @transform_1(%arg0: i32) -> (i32, i32) {
    %c0_i32 = arith.constant 0 : i32
    %c0_i32_0 = arith.constant 0 : i32
    %c0_i32_1 = arith.constant 0 : i32
    return %c0_i32, %c0_i32_0 : i32, i32
  }
  func.func @transform_2(%arg0: i32) -> (i32, i32) {
    %c0_i32 = arith.constant 0 : i32
    %c0_i32_0 = arith.constant 0 : i32
    %c0_i32_1 = arith.constant 0 : i32
    return %c0_i32, %c0_i32_0 : i32, i32
  }
  func.func @transform_3(%arg0: i32) -> (i32, i32) {
    %c0_i32 = arith.constant 0 : i32
    %c0_i32_0 = arith.constant 0 : i32
    %c0_i32_1 = arith.constant 0 : i32
    return %c0_i32, %c0_i32_0 : i32, i32
  }
}

module attributes {stable_mosaic.version = 11 : i64} {
  func.func @avwgcn_apply_kernel(%arg0: i32, %arg1: memref<64x4xf32, #tpu.memory_space<vmem>>, %arg2: memref<64x192xf32, #tpu.memory_space<vmem>>, %arg3: memref<108x96xf32, #tpu.memory_space<vmem>>, %arg4: memref<64x8xf32, #tpu.memory_space<vmem>>) attributes {dimension_semantics = [#tpu.dimension_semantics<parallel>], iteration_bounds = array<i64: 2>, scalar_prefetch = 0 : i64, scratch_operands = 0 : i64, tpu.core_type = #tpu.core_type<tc>, window_params = [{transform_indices = @transform_0, window_bounds = array<i64: 64, 4>}, {pipeline_mode = #tpu.pipeline_mode<synchronous>, transform_indices = @transform_1, window_bounds = array<i64: 64, 192>}, {pipeline_mode = #tpu.pipeline_mode<synchronous>, transform_indices = @transform_2, window_bounds = array<i64: 108, 96>}, {transform_indices = @transform_3, window_bounds = array<i64: 64, 8>}]} {
    %c0 = arith.constant 0 : index
    %c0_0 = arith.constant 0 : index
    %0 = vector.load %arg1[%c0, %c0_0] : memref<64x4xf32, #tpu.memory_space<vmem>>, vector<64x4xf32>
    %c0_1 = arith.constant 0 : index
    %c0_2 = arith.constant 0 : index
    %1 = vector.load %arg2[%c0_1, %c0_2] : memref<64x192xf32, #tpu.memory_space<vmem>>, vector<64x96xf32>
    %c0_3 = arith.constant 0 : index
    %c96 = arith.constant 96 : index
    %2 = vector.load %arg2[%c0_3, %c96] : memref<64x192xf32, #tpu.memory_space<vmem>>, vector<64x8xf32>
    %c0_4 = arith.constant 0 : index
    %c128 = arith.constant 128 : index
    %3 = vector.load %arg2[%c0_4, %c128] : memref<64x192xf32, #tpu.memory_space<vmem>>, vector<64x64xf32>
    %c0_5 = arith.constant 0 : index
    %c0_6 = arith.constant 0 : index
    %4 = vector.load %arg3[%c0_5, %c0_6] : memref<108x96xf32, #tpu.memory_space<vmem>>, vector<96x8xf32>
    %cst = arith.constant dense<0.000000e+00> : vector<64x4xf32>
    %5 = tpu.matmul %3, %0, %cst {dimension_numbers = #tpu.dot_dimension_numbers<[1], [0], [0], [1], [0, 0, 1, 1], [], []>} : vector<64x64xf32>, vector<64x4xf32>, vector<64x4xf32> -> vector<64x4xf32>
    %cst_7 = arith.constant dense<0.000000e+00> : vector<64x4xf32>
    %6 = tpu.matmul %3, %5, %cst_7 {dimension_numbers = #tpu.dot_dimension_numbers<[1], [0], [0], [1], [0, 0, 1, 1], [], []>} : vector<64x64xf32>, vector<64x4xf32>, vector<64x4xf32> -> vector<64x4xf32>
    %cst_8 = arith.constant 2.000000e+00 : f32
    %7 = vector.broadcast %cst_8 : f32 to vector<64x4xf32>
    %8 = arith.mulf %7, %6 : vector<64x4xf32>
    %9 = arith.subf %8, %0 : vector<64x4xf32>
    %c96_9 = arith.constant 96 : index
    %c0_10 = arith.constant 0 : index
    %10 = vector.load %arg3[%c96_9, %c0_10] : memref<108x96xf32, #tpu.memory_space<vmem>>, vector<4x96xf32>
    %cst_11 = arith.constant dense<0.000000e+00> : vector<64x96xf32>
    %11 = tpu.matmul %0, %10, %cst_11 {dimension_numbers = #tpu.dot_dimension_numbers<[1], [0], [0], [1], [0, 0, 1, 1], [], []>} : vector<64x4xf32>, vector<4x96xf32>, vector<64x96xf32> -> vector<64x96xf32>
    %c100 = arith.constant 100 : index
    %c0_12 = arith.constant 0 : index
    %12 = vector.load %arg3[%c100, %c0_12] : memref<108x96xf32, #tpu.memory_space<vmem>>, vector<4x96xf32>
    %cst_13 = arith.constant dense<0.000000e+00> : vector<64x96xf32>
    %13 = tpu.matmul %5, %12, %cst_13 {dimension_numbers = #tpu.dot_dimension_numbers<[1], [0], [0], [1], [0, 0, 1, 1], [], []>} : vector<64x4xf32>, vector<4x96xf32>, vector<64x96xf32> -> vector<64x96xf32>
    %14 = arith.addf %11, %13 : vector<64x96xf32>
    %c104 = arith.constant 104 : index
    %c0_14 = arith.constant 0 : index
    %15 = vector.load %arg3[%c104, %c0_14] : memref<108x96xf32, #tpu.memory_space<vmem>>, vector<4x96xf32>
    %cst_15 = arith.constant dense<0.000000e+00> : vector<64x96xf32>
    %16 = tpu.matmul %9, %15, %cst_15 {dimension_numbers = #tpu.dot_dimension_numbers<[1], [0], [0], [1], [0, 0, 1, 1], [], []>} : vector<64x4xf32>, vector<4x96xf32>, vector<64x96xf32> -> vector<64x96xf32>
    %17 = arith.addf %14, %16 : vector<64x96xf32>
    %18 = arith.mulf %17, %1 : vector<64x96xf32>
    %cst_16 = arith.constant dense<0.000000e+00> : vector<64x8xf32>
    %19 = tpu.matmul %18, %4, %cst_16 {dimension_numbers = #tpu.dot_dimension_numbers<[1], [0], [0], [1], [0, 0, 1, 1], [], []>} : vector<64x96xf32>, vector<96x8xf32>, vector<64x8xf32> -> vector<64x8xf32>
    %20 = arith.addf %19, %2 : vector<64x8xf32>
    %c0_17 = arith.constant 0 : index
    %c0_18 = arith.constant 0 : index
    %21 = vector.load %arg4[%c0_17, %c0_18] : memref<64x8xf32, #tpu.memory_space<vmem>>, vector<64x8xf32>
    tpu.vector_store %arg4[%c0_17, %c0_18], %20 {strides = array<i32>} : memref<64x8xf32, #tpu.memory_space<vmem>>, vector<64x8xf32>,
    return
  }
  func.func @transform_0(%arg0: i32) -> (i32, i32) {
    %c0_i32 = arith.constant 0 : i32
    %c0_i32_0 = arith.constant 0 : i32
    return %arg0, %c0_i32 : i32, i32
  }
  func.func @transform_1(%arg0: i32) -> (i32, i32) {
    %c0_i32 = arith.constant 0 : i32
    %c0_i32_0 = arith.constant 0 : i32
    %c0_i32_1 = arith.constant 0 : i32
    return %c0_i32, %c0_i32_0 : i32, i32
  }
  func.func @transform_2(%arg0: i32) -> (i32, i32) {
    %c0_i32 = arith.constant 0 : i32
    %c0_i32_0 = arith.constant 0 : i32
    %c0_i32_1 = arith.constant 0 : i32
    return %c0_i32, %c0_i32_0 : i32, i32
  }
  func.func @transform_3(%arg0: i32) -> (i32, i32) {
    %c0_i32 = arith.constant 0 : i32
    %c0_i32_0 = arith.constant 0 : i32
    return %arg0, %c0_i32 : i32, i32
  }
}

</mosaic_0001>

<llo_original>
// kernel: avwgcn_forward.2
$region0: #{avwgcn_forward.2}
  #allocation0 [shape = 'u32[]', space=smem, size = 0x4, offset = 0x4, fixed_abs, tag = 'smem constant byte address 0x4 - core index']
  #allocation1 [shape = 'u32[144,128]{1,0:T(1,128)}', space=vmem, size = 0x12000, scoped, tag = 'internal scratch']
  %s0 = inlined_call_operand.vmem [shape: f32[16,8], index: 0, kind: input, shape index: {}]
  %s1 = inlined_call_operand.vmem [shape: f32[8,24], index: 1, kind: input, shape index: {}]
  %s2 = inlined_call_operand.vmem [shape: f32[48,16], index: 2, kind: input, shape index: {}]
  %s3 = inlined_call_operand.vmem [shape: f32[16,24], index: 3, kind: output, shape index: {}]
  %s4 = sld [smem:[#allocation0]]
  $region22: #{avwgcn_forward.2} parent=0
    _
  %s6 = ssub.s32 1, %s4
  %s7 = scalar_select 0, %s6, %s4
  // Predicated region
  $region2: #{avwgcn_forward.2} parent=0 // pred_check
    _
  $region3: #{avwgcn_forward.2} parent=0 // pred_check_branch
    %9 = sbr.rel (0) target = $region5
  $region4: #{avwgcn_forward.2} parent=0 // pred_region
    _
  $region5: #{avwgcn_forward.2} parent=0 // pred_fallthru
    _
  // Predicated region
  $region6: #{avwgcn_forward.2} parent=0 // pred_check
    _
  $region7: #{avwgcn_forward.2} parent=0 // pred_check_branch
    %11 = sbr.rel (0) target = $region9
  $region8: #{avwgcn_forward.2} parent=0 // pred_region
    _
  $region9: #{avwgcn_forward.2} parent=0 // pred_fallthru
    _
  // Predicated region
  $region10: #{avwgcn_forward.2} parent=0 // pred_check
    _
  $region11: #{avwgcn_forward.2} parent=0 // pred_check_branch
    %13 = sbr.rel (0) target = $region13
  $region12: #{avwgcn_forward.2} parent=0 // pred_region
    _
  $region13: #{avwgcn_forward.2} parent=0 // pred_fallthru
    _
  %v14 = vld [vmem:[%s0] sm:$0xff]
  %v15 = vld [vmem:[%s0 + $0x8] sm:$0xff]
  %v16 = vld [vmem:[%s1] sm:$0xff]
  %vm17 = vcmask 64512
  %v19 = vsel %vm17, %v14, 0
  %v22 = vsel %vm17, %v15, 0
  %24 = vmatprep.subr.mxu0 0.0
  %25 = vmatpush1.msra.mxu0 0.0
  %26 = vmatprep.subr.mxu0 0.0
  %27 = vmatpush1.msra.mxu0 0.0
  %28 = vmatprep.subr.mxu0 0.0
  %29 = vmatpush1.msra.mxu0 0.0
  %30 = vmatprep.subr.mxu0 0.0
  %31 = vmatpush1.msra.mxu0 0.0
  %32 = vmatprep.subr.mxu0 0.0
  %33 = vmatpush1.msra.mxu0 0.0
  %34 = vmatprep.subr.mxu0 0.0
  %35 = vmatpush1.msra.mxu0 0.0
  %36 = vmatprep.subr.mxu0 0.0
  %37 = vmatpush1.msra.mxu0 0.0
  %38 = vmatprep.subr.mxu0 0.0
  %39 = vmatpush1.msra.mxu0 0.0
  %40 = vmatprep.subr.mxu0 0.0
  %41 = vmatpush1.msra.mxu0 0.0
  %42 = vmatprep.subr.mxu0 0.0
  %43 = vmatpush1.msra.mxu0 0.0
  %44 = vmatprep.subr.mxu0 0.0
  %45 = vmatpush1.msra.mxu0 0.0
  %46 = vmatprep.subr.mxu0 0.0
  %47 = vmatpush1.msra.mxu0 0.0
  %48 = vmatprep.subr.mxu0 0.0
  %49 = vmatpush1.msra.mxu0 0.0
  %50 = vmatprep.subr.mxu0 0.0
  %51 = vmatpush1.msra.mxu0 0.0
  %52 = vmatprep.subr.mxu0 0.0
  %53 = vmatpush1.msra.mxu0 0.0
  %54 = vmatprep.subr.mxu0 0.0
  %55 = vmatpush1.msra.mxu0 %v16
  %56 = vmatprep.subr.mxu0 0.0
  %57 = vmatpush2.msra.mxu0 0.0
  %58 = vmatprep.subr.mxu0 0.0
  %59 = vmatpush2.msra.mxu0 0.0
  %60 = vmatprep.subr.mxu0 0.0
  %61 = vmatpush2.msra.mxu0 0.0
  %62 = vmatprep.subr.mxu0 0.0
  %63 = vmatpush2.msra.mxu0 0.0
  %64 = vmatprep.subr.mxu0 0.0
  %65 = vmatpush2.msra.mxu0 0.0
  %66 = vmatprep.subr.mxu0 0.0
  %67 = vmatpush2.msra.mxu0 0.0
  %68 = vmatprep.subr.mxu0 0.0
  %69 = vmatpush2.msra.mxu0 0.0
  %70 = vmatprep.subr.mxu0 0.0
  %71 = vmatpush2.msra.mxu0 0.0
  %72 = vmatprep.subr.mxu0 0.0
  %73 = vmatpush2.msra.mxu0 0.0
  %74 = vmatprep.subr.mxu0 0.0
  %75 = vmatpush2.msra.mxu0 0.0
  %76 = vmatprep.subr.mxu0 0.0
  %77 = vmatpush2.msra.mxu0 0.0
  %78 = vmatprep.subr.mxu0 0.0
  %79 = vmatpush2.msra.mxu0 0.0
  %80 = vmatprep.subr.mxu0 0.0
  %81 = vmatpush2.msra.mxu0 0.0
  %82 = vmatprep.subr.mxu0 0.0
  %83 = vmatpush2.msra.mxu0 0.0
  %84 = vmatprep.subr.mxu0 0.0
  %85 = vmatpush2.msra.mxu0 0.0
  %86 = vmatprep.subr.mxu0 0.0
  %87 = vmatpush2.msra.mxu0 0.0
  %88 = vmatprep.mubr.f32.mxu0 0.0
  %89 = vmatmul.mubr.f32.gmra.mxu0 %v19
  %v90 = vpop.f32.mrf.mxu0
  %v91 = vadd.f32 0.0, %v90
  %v92 = vpop.f32.mrf.mxu0
  %93 = vmatprep.mubr.f32.mxu0 0.0
  %94 = vmatmul.mubr.f32.gmra.mxu0 %v22
  %v95 = vpop.f32.mrf.mxu0
  %v96 = vadd.f32 0.0, %v95
  %v97 = vpop.f32.mrf.mxu0
  %98 = vdwg.mxu0
  %v99 = vmax.f32 %v91, 0.0
  %v100 = vmax.f32 %v96, 0.0
  %v101 = vld [vmem:[%s2] sm:$0xff]
  %v102 = vld [vmem:[%s2 + $0x8] sm:$0xff]
  %v103 = vld [vmem:[%s2 + $0x10] sm:$0xff]
  %v104 = vld [vmem:[%s2 + $0x18] sm:$0xff]
  %v105 = vld [vmem:[%s2 + $0x20] sm:$0xff]
  %v106 = vld [vmem:[%s2 + $0x28] sm:$0xff]
  %vm107 = vcmask 130048
  %v108 = vsel %vm107, %v99, -inf
  %109 = vmax.xlane.f32.xlu0 %v108
  %v110 = vpop.xlane.xlu0 %109
  %v111 = vsel %vm107, %v100, -inf
  %112 = vmax.xlane.f32.xlu0 %v111
  %v113 = vpop.xlane.xlu0 %112
  %v114 = vsub.f32 %v99, %v110
  %v115 = vsub.f32 %v100, %v113
  %v116 = vmul.f32 %v114, 1.442695
  %v117 = vpow.pop %v116
  %v118 = vmul.f32 %v115, 1.442695
  %v119 = vpow.pop %v118
  %v120 = vsel %vm107, %v117, 0.0
  %121 = vadd.xlane.f32.xlu0 %v120
  %v122 = vpop.xlane.xlu0 %121
  %v123 = vsel %vm107, %v119, 0.0
  %124 = vadd.xlane.f32.xlu0 %v123
  %v125 = vpop.xlane.xlu0 %124
  %v126 = vrcp.pop %v122
  %v127 = vrcp.pop %v125
  %v128 = vmul.f32 %v117, %v126
  %v129 = vmul.f32 %v119, %v127
  %v131 = vsel %vm107, %v101, 0
  %v134 = vsel %vm107, %v102, 0
  %136 = vmatprep.subr.mxu0 0.0
  %137 = vmatpush1.msra.mxu0 0.0
  %138 = vmatprep.subr.mxu0 0.0
  %139 = vmatpush1.msra.mxu0 0.0
  %140 = vmatprep.subr.mxu0 0.0
  %141 = vmatpush1.msra.mxu0 0.0
  %142 = vmatprep.subr.mxu0 0.0
  %143 = vmatpush1.msra.mxu0 0.0
  %144 = vmatprep.subr.mxu0 0.0
  %145 = vmatpush1.msra.mxu0 0.0
  %146 = vmatprep.subr.mxu0 0.0
  %147 = vmatpush1.msra.mxu0 0.0
  %148 = vmatprep.subr.mxu0 0.0
  %149 = vmatpush1.msra.mxu0 0.0
  %150 = vmatprep.subr.mxu0 0.0
  %151 = vmatpush1.msra.mxu0 0.0
  %152 = vmatprep.subr.mxu0 0.0
  %153 = vmatpush1.msra.mxu0 0.0
  %154 = vmatprep.subr.mxu0 0.0
  %155 = vmatpush1.msra.mxu0 0.0
  %156 = vmatprep.subr.mxu0 0.0
  %157 = vmatpush1.msra.mxu0 0.0
  %158 = vmatprep.subr.mxu0 0.0
  %159 = vmatpush1.msra.mxu0 0.0
  %160 = vmatprep.subr.mxu0 0.0
  %161 = vmatpush1.msra.mxu0 0.0
  %162 = vmatprep.subr.mxu0 0.0
  %163 = vmatpush1.msra.mxu0 0.0
  %164 = vmatprep.subr.mxu0 0.0
  %165 = vmatpush1.msra.mxu0 %v106
  %166 = vmatprep.subr.mxu0 0.0
  %167 = vmatpush1.msra.mxu0 %v105
  %168 = vmatprep.subr.mxu0 0.0
  %169 = vmatpush2.msra.mxu0 0.0
  %170 = vmatprep.subr.mxu0 0.0
  %171 = vmatpush2.msra.mxu0 0.0
  %172 = vmatprep.subr.mxu0 0.0
  %173 = vmatpush2.msra.mxu0 0.0
  %174 = vmatprep.subr.mxu0 0.0
  %175 = vmatpush2.msra.mxu0 0.0
  %176 = vmatprep.subr.mxu0 0.0
  %177 = vmatpush2.msra.mxu0 0.0
  %178 = vmatprep.subr.mxu0 0.0
  %179 = vmatpush2.msra.mxu0 0.0
  %180 = vmatprep.subr.mxu0 0.0
  %181 = vmatpush2.msra.mxu0 0.0
  %182 = vmatprep.subr.mxu0 0.0
  %183 = vmatpush2.msra.mxu0 0.0
  %184 = vmatprep.subr.mxu0 0.0
  %185 = vmatpush2.msra.mxu0 0.0
  %186 = vmatprep.subr.mxu0 0.0
  %187 = vmatpush2.msra.mxu0 0.0
  %188 = vmatprep.subr.mxu0 0.0
  %189 = vmatpush2.msra.mxu0 0.0
  %190 = vmatprep.subr.mxu0 0.0
  %191 = vmatpush2.msra.mxu0 0.0
  %192 = vmatprep.subr.mxu0 0.0
  %193 = vmatpush2.msra.mxu0 0.0
  %194 = vmatprep.subr.mxu0 0.0
  %195 = vmatpush2.msra.mxu0 0.0
  %196 = vmatprep.subr.mxu0 0.0
  %197 = vmatpush2.msra.mxu0 0.0
  %198 = vmatprep.subr.mxu0 0.0
  %199 = vmatpush2.msra.mxu0 0.0
  %200 = vmatprep.mubr.f32.mxu0 0.0
  %201 = vmatmul.mubr.f32.gmra.mxu0 %v131
  %v202 = vpop.f32.mrf.mxu0
  %v203 = vadd.f32 0.0, %v202
  %v204 = vpop.f32.mrf.mxu0
  %205 = vmatprep.mubr.f32.mxu0 0.0
  %206 = vmatmul.mubr.f32.gmra.mxu0 %v134
  %v207 = vpop.f32.mrf.mxu0
  %v208 = vadd.f32 0.0, %v207
  %v209 = vpop.f32.mrf.mxu0
  %210 = vdwg.mxu0
  %v212 = vsel %vm107, %v128, 0
  %v215 = vsel %vm107, %v129, 0
  %217 = vmatprep.subr.mxu0 0.0
  %218 = vmatpush1.msra.mxu0 0.0
  %219 = vmatprep.subr.mxu0 0.0
  %220 = vmatpush1.msra.mxu0 0.0
  %221 = vmatprep.subr.mxu0 0.0
  %222 = vmatpush1.msra.mxu0 0.0
  %223 = vmatprep.subr.mxu0 0.0
  %224 = vmatpush1.msra.mxu0 0.0
  %225 = vmatprep.subr.mxu0 0.0
  %226 = vmatpush1.msra.mxu0 0.0
  %227 = vmatprep.subr.mxu0 0.0
  %228 = vmatpush1.msra.mxu0 0.0
  %229 = vmatprep.subr.mxu0 0.0
  %230 = vmatpush1.msra.mxu0 0.0
  %231 = vmatprep.subr.mxu0 0.0
  %232 = vmatpush1.msra.mxu0 0.0
  %233 = vmatprep.subr.mxu0 0.0
  %234 = vmatpush1.msra.mxu0 0.0
  %235 = vmatprep.subr.mxu0 0.0
  %236 = vmatpush1.msra.mxu0 0.0
  %237 = vmatprep.subr.mxu0 0.0
  %238 = vmatpush1.msra.mxu0 0.0
  %239 = vmatprep.subr.mxu0 0.0
  %240 = vmatpush1.msra.mxu0 0.0
  %241 = vmatprep.subr.mxu0 0.0
  %242 = vmatpush1.msra.mxu0 0.0
  %243 = vmatprep.subr.mxu0 0.0
  %244 = vmatpush1.msra.mxu0 0.0
  %245 = vmatprep.subr.mxu0 0.0
  %246 = vmatpush1.msra.mxu0 %v104
  %247 = vmatprep.subr.mxu0 0.0
  %248 = vmatpush1.msra.mxu0 %v103
  %249 = vmatprep.subr.mxu0 0.0
  %250 = vmatpush2.msra.mxu0 0.0
  %251 = vmatprep.subr.mxu0 0.0
  %252 = vmatpush2.msra.mxu0 0.0
  %253 = vmatprep.subr.mxu0 0.0
  %254 = vmatpush2.msra.mxu0 0.0
  %255 = vmatprep.subr.mxu0 0.0
  %256 = vmatpush2.msra.mxu0 0.0
  %257 = vmatprep.subr.mxu0 0.0
  %258 = vmatpush2.msra.mxu0 0.0
  %259 = vmatprep.subr.mxu0 0.0
  %260 = vmatpush2.msra.mxu0 0.0
  %261 = vmatprep.subr.mxu0 0.0
  %262 = vmatpush2.msra.mxu0 0.0
  %263 = vmatprep.subr.mxu0 0.0
  %264 = vmatpush2.msra.mxu0 0.0
  %265 = vmatprep.subr.mxu0 0.0
  %266 = vmatpush2.msra.mxu0 0.0
  %267 = vmatprep.subr.mxu0 0.0
  %268 = vmatpush2.msra.mxu0 0.0
  %269 = vmatprep.subr.mxu0 0.0
  %270 = vmatpush2.msra.mxu0 0.0
  %271 = vmatprep.subr.mxu0 0.0
  %272 = vmatpush2.msra.mxu0 0.0
  %273 = vmatprep.subr.mxu0 0.0
  %274 = vmatpush2.msra.mxu0 0.0
  %275 = vmatprep.subr.mxu0 0.0
  %276 = vmatpush2.msra.mxu0 0.0
  %277 = vmatprep.subr.mxu0 0.0
  %278 = vmatpush2.msra.mxu0 0.0
  %279 = vmatprep.subr.mxu0 0.0
  %280 = vmatpush2.msra.mxu0 0.0
  %281 = vmatprep.mubr.f32.mxu0 0.0
  %282 = vmatmul.mubr.f32.gmra.mxu0 %v212
  %v283 = vpop.f32.mrf.mxu0
  %v284 = vadd.f32 %v203, %v283
  %v285 = vpop.f32.mrf.mxu0
  %286 = vmatprep.mubr.f32.mxu0 0.0
  %287 = vmatmul.mubr.f32.gmra.mxu0 %v215
  %v288 = vpop.f32.mrf.mxu0
  %v289 = vadd.f32 %v208, %v288
  %v290 = vpop.f32.mrf.mxu0
  %291 = vdwg.mxu0
  %v292 = vxor.u32 %v284, 2147483648
  %v293 = vxor.u32 %v289, 2147483648
  %v294 = vmul.f32 %v292, 1.442695
  %v295 = vpow.pop %v294
  %v296 = vmul.f32 %v293, 1.442695
  %v297 = vpow.pop %v296
  %v298 = vadd.f32 %v295, 1.0
  %v299 = vadd.f32 %v297, 1.0
  %v300 = vrcp.pop %v298
  %v301 = vmul.f32 1.0, %v300
  %v302 = vrcp.pop %v299
  %v303 = vmul.f32 1.0, %v302
  %v304 = vmul.f32 %v301, %v101
  %v305 = vmul.f32 %v303, %v102
  %v306 = vsub.f32 1.0, %v301
  %v307 = vsub.f32 1.0, %v303
  %v308 = vmul.f32 %v306, %v128
  %v309 = vmul.f32 %v307, %v129
  %v310 = vadd.f32 %v304, %v308
  %v311 = vadd.f32 %v305, %v309
  %v312 = vsel %vm107, %v310, %v91
  %v313 = vsel %vm107, %v311, %v96
  %vm314 = vcmask 195584
  %315 = vst.msk [vmem:[%s3] sm:$0xff] %vm314, %v312
  %316 = vst.msk [vmem:[%s3 + $0x8] sm:$0xff] %vm314, %v313
  // Predicated region
  $region14: #{avwgcn_forward.2} parent=0 // pred_check
    _
  $region15: #{avwgcn_forward.2} parent=0 // pred_check_branch
    %318 = sbr.rel (0) target = $region17
  $region16: #{avwgcn_forward.2} parent=0 // pred_region
    _
  $region17: #{avwgcn_forward.2} parent=0 // pred_fallthru
    _
  // Predicated region
  $region18: #{avwgcn_forward.2} parent=0 // pred_check
    _
  $region19: #{avwgcn_forward.2} parent=0 // pred_check_branch
    %320 = sbr.rel (0) target = $region21
  $region20: #{avwgcn_forward.2} parent=0 // pred_region
    _
  $region21: #{avwgcn_forward.2} parent=0 // pred_fallthru
    _

// kernel: avwgcn_forward.3
$region0: #{avwgcn_forward.3}
  #allocation0 [shape = 'u32[]', space=smem, size = 0x4, offset = 0x4, fixed_abs, tag = 'smem constant byte address 0x4 - core index']
  #allocation1 [shape = 'u32[144,128]{1,0:T(1,128)}', space=vmem, size = 0x12000, scoped, tag = 'internal scratch']
  %s0 = inlined_call_operand.vmem [shape: f32[128,4], index: 0, kind: input, shape index: {}]
  %s1 = inlined_call_operand.vmem [shape: f32[64,192], index: 1, kind: input, shape index: {}]
  %s2 = inlined_call_operand.vmem [shape: f32[108,96], index: 2, kind: input, shape index: {}]
  %s3 = inlined_call_operand.vmem [shape: f32[128,8], index: 3, kind: output, shape index: {}]
  %s4 = sld [smem:[#allocation0]]
  $region45: #{avwgcn_forward.3} parent=0
    _
  %s6 = ssub.s32 1, %s4
  %s7 = scalar_select 0, %s6, %s4
  loop: start=0, step=1, limit=4
  $region2: #{avwgcn_forward.3} parent=0 // loop_pre_header
    _
  $region3: #{avwgcn_forward.3} parent=0 // loop_header
    %s9 = sphi 0, %s13
    %p10 = scmp.ge.s32.totalorder %s9, 4
    %s19 = sphi 0, %s21
    %s22 = sphi 0, %s19
    %s23 = sphi 0, %s22
    %s39 = sphi 0, %s23
    %s43 = sphi 0, %s43
    %s45 = sphi 0, %s43
    %s46 = sphi 0, %s45
    %s60 = sphi 0, %s46
    %s64 = sphi 0, %s64
    %s66 = sphi 0, %s64
    %s67 = sphi 0, %s66
    %s81 = sphi 0, %s67
    %s87 = sphi 0, %s89
    %s90 = sphi 0, %s87
    %s91 = sphi 0, %s90
    %s107 = sphi 0, %s91
  $region4: #{avwgcn_forward.3} parent=0 // loop_header_branch
    %12 = sbr.rel (%p10) target = $region8
  $region5: #{avwgcn_forward.3} parent=0 // loop_body
    %s14 = ssub.s32 %s9, 1
    %s15 = ssub.s32 %s9, 2
    %s16 = sadd.s32 %s9, 1
    %s17 = ssub.s32 %s9, %s16
    %p18 = scmp.eq.s32.totalorder %s17, 0
    %s20 = sadd.s32 %s19, 1
    %s21 = scalar_select %p18, %s19, %s20
    %p24 = pneg %p18
    %p25 = scmp.eq.s32.totalorder %s9, 1
    %p26 = por %p24, %p25
    %p27 = scmp.ne.s32.totalorder %s19, %s22
    %p28 = scmp.eq.s32.totalorder %s9, 0
    %p29 = por %p27, %p28
    %p30 = scmp.ne.s32.totalorder %s19, %s22
    %p31 = scmp.eq.s32.totalorder %s14, 1
    %p32 = por %p30, %p31
    %p33 = scmp.ne.s32.totalorder %s22, %s23
    %p34 = scmp.eq.s32.totalorder %s14, 0
    %p35 = por %p33, %p34
    %p36 = scmp.ne.s32.totalorder %s22, %s23
    %p37 = scmp.eq.s32.totalorder %s15, 1
    %p38 = por %p36, %p37
    %p40 = scmp.ne.s32.totalorder %s23, %s39
    %p41 = scmp.eq.s32.totalorder %s15, 0
    %p42 = por %p40, %p41
    %s44 = sadd.s32 %s43, 1
    %p47 = scmp.eq.s32.totalorder %s9, 1
    %p48 = scmp.ne.s32.totalorder %s43, %s45
    %p49 = scmp.eq.s32.totalorder %s9, 0
    %p50 = por %p48, %p49
    %p51 = scmp.ne.s32.totalorder %s43, %s45
    %p52 = scmp.eq.s32.totalorder %s14, 1
    %p53 = por %p51, %p52
    %p54 = scmp.ne.s32.totalorder %s45, %s46
    %p55 = scmp.eq.s32.totalorder %s14, 0
    %p56 = por %p54, %p55
    %p57 = scmp.ne.s32.totalorder %s45, %s46
    %p58 = scmp.eq.s32.totalorder %s15, 1
    %p59 = por %p57, %p58
    %p61 = scmp.ne.s32.totalorder %s46, %s60
    %p62 = scmp.eq.s32.totalorder %s15, 0
    %p63 = por %p61, %p62
    %s65 = sadd.s32 %s64, 1
    %p68 = scmp.eq.s32.totalorder %s9, 1
    %p69 = scmp.ne.s32.totalorder %s64, %s66
    %p70 = scmp.eq.s32.totalorder %s9, 0
    %p71 = por %p69, %p70
    %p72 = scmp.ne.s32.totalorder %s64, %s66
    %p73 = scmp.eq.s32.totalorder %s14, 1
    %p74 = por %p72, %p73
    %p75 = scmp.ne.s32.totalorder %s66, %s67
    %p76 = scmp.eq.s32.totalorder %s14, 0
    %p77 = por %p75, %p76
    %p78 = scmp.ne.s32.totalorder %s66, %s67
    %p79 = scmp.eq.s32.totalorder %s15, 1
    %p80 = por %p78, %p79
    %p82 = scmp.ne.s32.totalorder %s67, %s81
    %p83 = scmp.eq.s32.totalorder %s15, 0
    %p84 = por %p82, %p83
    %s85 = ssub.s32 %s9, %s16
    %p86 = scmp.eq.s32.totalorder %s85, 0
    %s88 = sadd.s32 %s87, 1
    %s89 = scalar_select %p86, %s87, %s88
    %p92 = pneg %p86
    %p93 = scmp.eq.s32.totalorder %s9, 1
    %p94 = por %p92, %p93
    %p95 = scmp.ne.s32.totalorder %s87, %s90
    %p96 = scmp.eq.s32.totalorder %s9, 0
    %p97 = por %p95, %p96
    %p98 = scmp.ne.s32.totalorder %s87, %s90
    %p99 = scmp.eq.s32.totalorder %s14, 1
    %p100 = por %p98, %p99
    %p101 = scmp.ne.s32.totalorder %s90, %s91
    %p102 = scmp.eq.s32.totalorder %s14, 0
    %p103 = por %p101, %p102
    %p104 = scmp.ne.s32.totalorder %s90, %s91
    %p105 = scmp.eq.s32.totalorder %s15, 1
    %p106 = por %p104, %p105
    %p108 = scmp.ne.s32.totalorder %s91, %s107
    %p109 = scmp.eq.s32.totalorder %s15, 0
    %p110 = por %p108, %p109
    %p111 = scmp.le.s32.totalorder 1, %s9
    %p112 = scmp.lt.s32.totalorder %s9, 3
    %p113 = pnand %p111, %p112
    %p114 = pneg %p113
    // Predicated region
    $region9: #{avwgcn_forward.3} parent=5 // pred_check
      _
    $region10: #{avwgcn_forward.3} parent=5 // pred_check_branch
      %116 = sbr.rel (%p113) target = $region12
    $region11: #{avwgcn_forward.3} parent=5 // pred_region
      %s117 = ssub.s32 %s9, 1
      // Predicated region
      $region13: #{avwgcn_forward.3} parent=11 // pred_check
        %p118 = pneg %p56
      $region14: #{avwgcn_forward.3} parent=11 // pred_check_branch
        %120 = sbr.rel (%p118) target = $region16
      $region15: #{avwgcn_forward.3} parent=11 // pred_region
        _
      $region16: #{avwgcn_forward.3} parent=11 // pred_fallthru
        _
      // Predicated region
      $region17: #{avwgcn_forward.3} parent=11 // pred_check
        %p121 = pneg %p77
      $region18: #{avwgcn_forward.3} parent=11 // pred_check_branch
        %123 = sbr.rel (%p121) target = $region20
      $region19: #{avwgcn_forward.3} parent=11 // pred_region
        _
      $region20: #{avwgcn_forward.3} parent=11 // pred_fallthru
        _
    $region12: #{avwgcn_forward.3} parent=5 // pred_fallthru
      _
    %p124 = scmp.lt.s32.totalorder %s9, 2
    // Predicated region
    $region21: #{avwgcn_forward.3} parent=5 // pred_check
      %p125 = pneg %p124
    $region22: #{avwgcn_forward.3} parent=5 // pred_check_branch
      %127 = sbr.rel (%p125) target = $region24
    $region23: #{avwgcn_forward.3} parent=5 // pred_region
      // Predicated region
      $region25: #{avwgcn_forward.3} parent=23 // pred_check
        %p128 = pneg %p29
      $region26: #{avwgcn_forward.3} parent=23 // pred_check_branch
        %130 = sbr.rel (%p128) target = $region28
      $region27: #{avwgcn_forward.3} parent=23 // pred_region
        %s131 = smul.u32 8, %s9
        %p132 = scmp.lt.s32.totalorder %s131, 15
        %s133 = scalar_select %p132, %s131, 15
        %s134 = smul.addr %s133, 8
        %s135 = scalar_lea.vmem %s0, %s134
        %s136 = smul.u32 8, %s9
      $region28: #{avwgcn_forward.3} parent=23 // pred_fallthru
        _
    $region24: #{avwgcn_forward.3} parent=5 // pred_fallthru
      _
    %p137 = scmp.le.s32.totalorder 1, %s9
    %p138 = scmp.lt.s32.totalorder %s9, 3
    %p139 = pnand %p137, %p138
    %p140 = pneg %p139
    // Predicated region
    $region29: #{avwgcn_forward.3} parent=5 // pred_check
      _
    $region30: #{avwgcn_forward.3} parent=5 // pred_check_branch
      %142 = sbr.rel (%p139) target = $region32
    $region31: #{avwgcn_forward.3} parent=5 // pred_region
      %s143 = ssub.s32 %s9, 1
      %s144 = smul.u32 8, %s14
      %p145 = scmp.lt.s32.totalorder %s144, 15
      %s146 = scalar_select %p145, %s144, 15
      %s147 = smul.addr %s146, 8
      %s148 = scalar_lea.vmem %s0, %s147
      %p149 = pneg %p35
      %p150 = pneg %p32
      %p151 = pneg %p56
      %p152 = pneg %p53
      %p153 = pneg %p77
      %p154 = pneg %p74
      %p155 = pneg %p103
      %p156 = pneg %p100
      %s157 = smul.u32 8, %s14
      %p158 = scmp.lt.s32.totalorder %s157, 15
      %s159 = scalar_select %p158, %s157, 15
      %s160 = smul.addr %s159, 8
      %s161 = scalar_lea.vmem %s3, %s160
      %s162 = smul.u32 8, %s14
      %p163 = scmp.lt.s32.totalorder %s162, 15
      %s164 = scalar_select %p163, %s162, 15
      %s165 = smul.addr %s164, 8
      %s166 = scalar_lea.vmem %s0, %s165
      %s167 = smul.u32 8, %s14
      %s168 = smul.u32 8, %s14
      %p169 = scmp.lt.s32.totalorder %s168, 15
      %s170 = scalar_select %p169, %s168, 15
      %s171 = smul.addr %s170, 8
      %s172 = scalar_lea.vmem %s3, %s171
      %s173 = smul.u32 8, %s14
      %v174 = vld [vmem:[%s166] sm:$0xff]
      %v175 = vld [vmem:[%s166 + $0x8] sm:$0xff]
      %v176 = vld [vmem:[%s166 + $0x10] sm:$0xff]
      %v177 = vld [vmem:[%s166 + $0x18] sm:$0xff]
      %v178 = vld [vmem:[%s166 + $0x20] sm:$0xff]
      %v179 = vld [vmem:[%s166 + $0x28] sm:$0xff]
      %v180 = vld [vmem:[%s166 + $0x30] sm:$0xff]
      %v181 = vld [vmem:[%s166 + $0x38] sm:$0xff]
      %v182 = vld [vmem:[%s1] sm:$0xff]
      %v183 = vld [vmem:[%s1 + $0x10] sm:$0xff]
      %v184 = vld [vmem:[%s1 + $0x20] sm:$0xff]
      %v185 = vld [vmem:[%s1 + $0x30] sm:$0xff]
      %v186 = vld [vmem:[%s1 + $0x40] sm:$0xff]
      %v187 = vld [vmem:[%s1 + $0x50] sm:$0xff]
      %v188 = vld [vmem:[%s1 + $0x60] sm:$0xff]
      %v189 = vld [vmem:[%s1 + $0x70] sm:$0xff]
      %v190 = vld [vmem:[%s1 + $0x8] sm:$0xff]
      %v191 = vld [vmem:[%s1 + $0x18] sm:$0xff]
      %v192 = vld [vmem:[%s1 + $0x28] sm:$0xff]
      %v193 = vld [vmem:[%s1 + $0x38] sm:$0xff]
      %v194 = vld [vmem:[%s1 + $0x48] sm:$0xff]
      %v195 = vld [vmem:[%s1 + $0x58] sm:$0xff]
      %v196 = vld [vmem:[%s1 + $0x68] sm:$0xff]
      %v197 = vld [vmem:[%s1 + $0x78] sm:$0xff]
      %v198 = vld [vmem:[%s2] sm:$0xff]
      %v199 = vld [vmem:[%s2 + $0x8] sm:$0xff]
      %v200 = vld [vmem:[%s2 + $0x10] sm:$0xff]
      %v201 = vld [vmem:[%s2 + $0x18] sm:$0xff]
      %v202 = vld [vmem:[%s2 + $0x20] sm:$0xff]
      %v203 = vld [vmem:[%s2 + $0x28] sm:$0xff]
      %v204 = vld [vmem:[%s2 + $0x30] sm:$0xff]
      %v205 = vld [vmem:[%s2 + $0x38] sm:$0xff]
      %v206 = vld [vmem:[%s2 + $0x40] sm:$0xff]
      %v207 = vld [vmem:[%s2 + $0x48] sm:$0xff]
      %v208 = vld [vmem:[%s2 + $0x50] sm:$0xff]
      %v209 = vld [vmem:[%s2 + $0x58] sm:$0xff]
      %vm210 = vcmask 523264
      %v212 = vsel %vm210, %v190, 0
      %v215 = vsel %vm210, %v191, 0
      %v218 = vsel %vm210, %v192, 0
      %v221 = vsel %vm210, %v193, 0
      %v224 = vsel %vm210, %v194, 0
      %v227 = vsel %vm210, %v195, 0
      %v230 = vsel %vm210, %v196, 0
      %v233 = vsel %vm210, %v197, 0
      %235 = vmatprep.subr.mxu0 0.0
      %236 = vmatpush1.msra.mxu0 0.0
      %237 = vmatprep.subr.mxu0 0.0
      %238 = vmatpush1.msra.mxu0 0.0
      %239 = vmatprep.subr.mxu0 0.0
      %240 = vmatpush1.msra.mxu0 0.0
      %241 = vmatprep.subr.mxu0 0.0
      %242 = vmatpush1.msra.mxu0 0.0
      %243 = vmatprep.subr.mxu0 0.0
      %244 = vmatpush1.msra.mxu0 0.0
      %245 = vmatprep.subr.mxu0 0.0
      %246 = vmatpush1.msra.mxu0 0.0
      %247 = vmatprep.subr.mxu0 0.0
      %248 = vmatpush1.msra.mxu0 0.0
      %249 = vmatprep.subr.mxu0 0.0
      %250 = vmatpush1.msra.mxu0 0.0
      %251 = vmatprep.subr.mxu0 0.0
      %252 = vmatpush1.msra.mxu0 %v181
      %253 = vmatprep.subr.mxu0 0.0
      %254 = vmatpush1.msra.mxu0 %v180
      %255 = vmatprep.subr.mxu0 0.0
      %256 = vmatpush1.msra.mxu0 %v179
      %257 = vmatprep.subr.mxu0 0.0
      %258 = vmatpush1.msra.mxu0 %v178
      %259 = vmatprep.subr.mxu0 0.0
      %260 = vmatpush1.msra.mxu0 %v177
      %261 = vmatprep.subr.mxu0 0.0
      %262 = vmatpush1.msra.mxu0 %v176
      %263 = vmatprep.subr.mxu0 0.0
      %264 = vmatpush1.msra.mxu0 %v175
      %265 = vmatprep.subr.mxu0 0.0
      %266 = vmatpush1.msra.mxu0 %v174
      %267 = vmatprep.subr.mxu0 0.0
      %268 = vmatpush2.msra.mxu0 0.0
      %269 = vmatprep.subr.mxu0 0.0
      %270 = vmatpush2.msra.mxu0 0.0
      %271 = vmatprep.subr.mxu0 0.0
      %272 = vmatpush2.msra.mxu0 0.0
      %273 = vmatprep.subr.mxu0 0.0
      %274 = vmatpush2.msra.mxu0 0.0
      %275 = vmatprep.subr.mxu0 0.0
      %276 = vmatpush2.msra.mxu0 0.0
      %277 = vmatprep.subr.mxu0 0.0
      %278 = vmatpush2.msra.mxu0 0.0
      %279 = vmatprep.subr.mxu0 0.0
      %280 = vmatpush2.msra.mxu0 0.0
      %281 = vmatprep.subr.mxu0 0.0
      %282 = vmatpush2.msra.mxu0 0.0
      %283 = vmatprep.subr.mxu0 0.0
      %284 = vmatpush2.msra.mxu0 0.0
      %285 = vmatprep.subr.mxu0 0.0
      %286 = vmatpush2.msra.mxu0 0.0
      %287 = vmatprep.subr.mxu0 0.0
      %288 = vmatpush2.msra.mxu0 0.0
      %289 = vmatprep.subr.mxu0 0.0
      %290 = vmatpush2.msra.mxu0 0.0
      %291 = vmatprep.subr.mxu0 0.0
      %292 = vmatpush2.msra.mxu0 0.0
      %293 = vmatprep.subr.mxu0 0.0
      %294 = vmatpush2.msra.mxu0 0.0
      %295 = vmatprep.subr.mxu0 0.0
      %296 = vmatpush2.msra.mxu0 0.0
      %297 = vmatprep.subr.mxu0 0.0
      %298 = vmatpush2.msra.mxu0 0.0
      %299 = vmatprep.mubr.f32.mxu0 0.0
      %300 = vmatmul.mubr.f32.gmra.mxu0 %v212
      %v301 = vpop.f32.mrf.mxu0
      %v302 = vadd.f32 0.0, %v301
      %v303 = vpop.f32.mrf.mxu0
      %304 = vmatprep.mubr.f32.mxu0 0.0
      %305 = vmatmul.mubr.f32.gmra.mxu0 %v215
      %v306 = vpop.f32.mrf.mxu0
      %v307 = vadd.f32 0.0, %v306
      %v308 = vpop.f32.mrf.mxu0
      %309 = vmatprep.mubr.f32.mxu0 0.0
      %310 = vmatmul.mubr.f32.gmra.mxu0 %v218
      %v311 = vpop.f32.mrf.mxu0
      %v312 = vadd.f32 0.0, %v311
      %v313 = vpop.f32.mrf.mxu0
      %314 = vmatprep.mubr.f32.mxu0 0.0
      %315 = vmatmul.mubr.f32.gmra.mxu0 %v221
      %v316 = vpop.f32.mrf.mxu0
      %v317 = vadd.f32 0.0, %v316
      %v318 = vpop.f32.mrf.mxu0
      %319 = vmatprep.mubr.f32.mxu0 0.0
      %320 = vmatmul.mubr.f32.gmra.mxu0 %v224
      %v321 = vpop.f32.mrf.mxu0
      %v322 = vadd.f32 0.0, %v321
      %v323 = vpop.f32.mrf.mxu0
      %324 = vmatprep.mubr.f32.mxu0 0.0
      %325 = vmatmul.mubr.f32.gmra.mxu0 %v227
      %v326 = vpop.f32.mrf.mxu0
      %v327 = vadd.f32 0.0, %v326
      %v328 = vpop.f32.mrf.mxu0
      %329 = vmatprep.mubr.f32.mxu0 0.0
      %330 = vmatmul.mubr.f32.gmra.mxu0 %v230
      %v331 = vpop.f32.mrf.mxu0
      %v332 = vadd.f32 0.0, %v331
      %v333 = vpop.f32.mrf.mxu0
      %334 = vmatprep.mubr.f32.mxu0 0.0
      %335 = vmatmul.mubr.f32.gmra.mxu0 %v233
      %v336 = vpop.f32.mrf.mxu0
      %v337 = vadd.f32 0.0, %v336
      %v338 = vpop.f32.mrf.mxu0
      %339 = vdwg.mxu0
      %340 = vmatprep.subr.mxu0 0.0
      %341 = vmatpush1.msra.mxu0 0.0
      %342 = vmatprep.subr.mxu0 0.0
      %343 = vmatpush1.msra.mxu0 0.0
      %344 = vmatprep.subr.mxu0 0.0
      %345 = vmatpush1.msra.mxu0 0.0
      %346 = vmatprep.subr.mxu0 0.0
      %347 = vmatpush1.msra.mxu0 0.0
      %348 = vmatprep.subr.mxu0 0.0
      %349 = vmatpush1.msra.mxu0 0.0
      %350 = vmatprep.subr.mxu0 0.0
      %351 = vmatpush1.msra.mxu0 0.0
      %352 = vmatprep.subr.mxu0 0.0
      %353 = vmatpush1.msra.mxu0 0.0
      %354 = vmatprep.subr.mxu0 0.0
      %355 = vmatpush1.msra.mxu0 0.0
      %356 = vmatprep.subr.mxu0 0.0
      %357 = vmatpush1.msra.mxu0 %v337
      %358 = vmatprep.subr.mxu0 0.0
      %359 = vmatpush1.msra.mxu0 %v332
      %360 = vmatprep.subr.mxu0 0.0
      %361 = vmatpush1.msra.mxu0 %v327
      %362 = vmatprep.subr.mxu0 0.0
      %363 = vmatpush1.msra.mxu0 %v322
      %364 = vmatprep.subr.mxu0 0.0
      %365 = vmatpush1.msra.mxu0 %v317
      %366 = vmatprep.subr.mxu0 0.0
      %367 = vmatpush1.msra.mxu0 %v312
      %368 = vmatprep.subr.mxu0 0.0
      %369 = vmatpush1.msra.mxu0 %v307
      %370 = vmatprep.subr.mxu0 0.0
      %371 = vmatpush1.msra.mxu0 %v302
      %372 = vmatprep.subr.mxu0 0.0
      %373 = vmatpush2.msra.mxu0 0.0
      %374 = vmatprep.subr.mxu0 0.0
      %375 = vmatpush2.msra.mxu0 0.0
      %376 = vmatprep.subr.mxu0 0.0
      %377 = vmatpush2.msra.mxu0 0.0
      %378 = vmatprep.subr.mxu0 0.0
      %379 = vmatpush2.msra.mxu0 0.0
      %380 = vmatprep.subr.mxu0 0.0
      %381 = vmatpush2.msra.mxu0 0.0
      %382 = vmatprep.subr.mxu0 0.0
      %383 = vmatpush2.msra.mxu0 0.0
      %384 = vmatprep.subr.mxu0 0.0
      %385 = vmatpush2.msra.mxu0 0.0
      %386 = vmatprep.subr.mxu0 0.0
      %387 = vmatpush2.msra.mxu0 0.0
      %388 = vmatprep.subr.mxu0 0.0
      %389 = vmatpush2.msra.mxu0 0.0
      %390 = vmatprep.subr.mxu0 0.0
      %391 = vmatpush2.msra.mxu0 0.0
      %392 = vmatprep.subr.mxu0 0.0
      %393 = vmatpush2.msra.mxu0 0.0
      %394 = vmatprep.subr.mxu0 0.0
      %395 = vmatpush2.msra.mxu0 0.0
      %396 = vmatprep.subr.mxu0 0.0
      %397 = vmatpush2.msra.mxu0 0.0
      %398 = vmatprep.subr.mxu0 0.0
      %399 = vmatpush2.msra.mxu0 0.0
      %400 = vmatprep.subr.mxu0 0.0
      %401 = vmatpush2.msra.mxu0 0.0
      %402 = vmatprep.subr.mxu0 0.0
      %403 = vmatpush2.msra.mxu0 0.0
      %404 = vmatprep.mubr.f32.mxu0 0.0
      %405 = vmatmul.mubr.f32.gmra.mxu0 %v212
      %v406 = vpop.f32.mrf.mxu0
      %v407 = vadd.f32 0.0, %v406
      %v408 = vpop.f32.mrf.mxu0
      %409 = vmatprep.mubr.f32.mxu0 0.0
      %410 = vmatmul.mubr.f32.gmra.mxu0 %v215
      %v411 = vpop.f32.mrf.mxu0
      %v412 = vadd.f32 0.0, %v411
      %v413 = vpop.f32.mrf.mxu0
      %414 = vmatprep.mubr.f32.mxu0 0.0
      %415 = vmatmul.mubr.f32.gmra.mxu0 %v218
      %v416 = vpop.f32.mrf.mxu0
      %v417 = vadd.f32 0.0, %v416
      %v418 = vpop.f32.mrf.mxu0
      %419 = vmatprep.mubr.f32.mxu0 0.0
      %420 = vmatmul.mubr.f32.gmra.mxu0 %v221
      %v421 = vpop.f32.mrf.mxu0
      %v422 = vadd.f32 0.0, %v421
      %v423 = vpop.f32.mrf.mxu0
      %424 = vmatprep.mubr.f32.mxu0 0.0
      %425 = vmatmul.mubr.f32.gmra.mxu0 %v224
      %v426 = vpop.f32.mrf.mxu0
      %v427 = vadd.f32 0.0, %v426
      %v428 = vpop.f32.mrf.mxu0
      %429 = vmatprep.mubr.f32.mxu0 0.0
      %430 = vmatmul.mubr.f32.gmra.mxu0 %v227
      %v431 = vpop.f32.mrf.mxu0
      %v432 = vadd.f32 0.0, %v431
      %v433 = vpop.f32.mrf.mxu0
      %434 = vmatprep.mubr.f32.mxu0 0.0
      %435 = vmatmul.mubr.f32.gmra.mxu0 %v230
      %v436 = vpop.f32.mrf.mxu0
      %v437 = vadd.f32 0.0, %v436
      %v438 = vpop.f32.mrf.mxu0
      %439 = vmatprep.mubr.f32.mxu0 0.0
      %440 = vmatmul.mubr.f32.gmra.mxu0 %v233
      %v441 = vpop.f32.mrf.mxu0
      %v442 = vadd.f32 0.0, %v441
      %v443 = vpop.f32.mrf.mxu0
      %444 = vdwg.mxu0
      %v445 = vmul.f32 %v407, 2.0
      %v446 = vmul.f32 %v412, 2.0
      %v447 = vmul.f32 %v417, 2.0
      %v448 = vmul.f32 %v422, 2.0
      %v449 = vmul.f32 %v427, 2.0
      %v450 = vmul.f32 %v432, 2.0
      %v451 = vmul.f32 %v437, 2.0
      %v452 = vmul.f32 %v442, 2.0
      %v453 = vsub.f32 %v445, %v174
      %v454 = vsub.f32 %v446, %v175
      %v455 = vsub.f32 %v447, %v176
      %v456 = vsub.f32 %v448, %v177
      %v457 = vsub.f32 %v449, %v178
      %v458 = vsub.f32 %v450, %v179
      %v459 = vsub.f32 %v451, %v180
      %v460 = vsub.f32 %v452, %v181
      %v461 = vld [vmem:[%s2 + $0x60] sm:$0xf]
      %v462 = vld [vmem:[%s2 + $0x64] sm:$0xf]
      %vm463 = vcmask 31744
      %v465 = vsel %vm463, %v302, 0
      %v468 = vsel %vm463, %v307, 0
      %v471 = vsel %vm463, %v312, 0
      %v474 = vsel %vm463, %v317, 0
      %v477 = vsel %vm463, %v322, 0
      %v480 = vsel %vm463, %v327, 0
      %v483 = vsel %vm463, %v332, 0
      %v486 = vsel %vm463, %v337, 0
      %vm488 = vcmask 1043456
      %v490 = vsel %vm488, %v462, 0
      %492 = vmatprep.subr.mxu0 0.0
      %493 = vmatpush1.msra.mxu0 0.0
      %494 = vmatprep.subr.mxu0 0.0
      %495 = vmatpush1.msra.mxu0 0.0
      %496 = vmatprep.subr.mxu0 0.0
      %497 = vmatpush1.msra.mxu0 0.0
      %498 = vmatprep.subr.mxu0 0.0
      %499 = vmatpush1.msra.mxu0 0.0
      %500 = vmatprep.subr.mxu0 0.0
      %501 = vmatpush1.msra.mxu0 0.0
      %502 = vmatprep.subr.mxu0 0.0
      %503 = vmatpush1.msra.mxu0 0.0
      %504 = vmatprep.subr.mxu0 0.0
      %505 = vmatpush1.msra.mxu0 0.0
      %506 = vmatprep.subr.mxu0 0.0
      %507 = vmatpush1.msra.mxu0 0.0
      %508 = vmatprep.subr.mxu0 0.0
      %509 = vmatpush1.msra.mxu0 0.0
      %510 = vmatprep.subr.mxu0 0.0
      %511 = vmatpush1.msra.mxu0 0.0
      %512 = vmatprep.subr.mxu0 0.0
      %513 = vmatpush1.msra.mxu0 0.0
      %514 = vmatprep.subr.mxu0 0.0
      %515 = vmatpush1.msra.mxu0 0.0
      %516 = vmatprep.subr.mxu0 0.0
      %517 = vmatpush1.msra.mxu0 0.0
      %518 = vmatprep.subr.mxu0 0.0
      %519 = vmatpush1.msra.mxu0 0.0
      %520 = vmatprep.subr.mxu0 0.0
      %521 = vmatpush1.msra.mxu0 0.0
      %522 = vmatprep.subr.mxu0 0.0
      %523 = vmatpush1.msra.mxu0 %v490
      %524 = vmatprep.subr.mxu0 0.0
      %525 = vmatpush2.msra.mxu0 0.0
      %526 = vmatprep.subr.mxu0 0.0
      %527 = vmatpush2.msra.mxu0 0.0
      %528 = vmatprep.subr.mxu0 0.0
      %529 = vmatpush2.msra.mxu0 0.0
      %530 = vmatprep.subr.mxu0 0.0
      %531 = vmatpush2.msra.mxu0 0.0
      %532 = vmatprep.subr.mxu0 0.0
      %533 = vmatpush2.msra.mxu0 0.0
      %534 = vmatprep.subr.mxu0 0.0
      %535 = vmatpush2.msra.mxu0 0.0
      %536 = vmatprep.subr.mxu0 0.0
      %537 = vmatpush2.msra.mxu0 0.0
      %538 = vmatprep.subr.mxu0 0.0
      %539 = vmatpush2.msra.mxu0 0.0
      %540 = vmatprep.subr.mxu0 0.0
      %541 = vmatpush2.msra.mxu0 0.0
      %542 = vmatprep.subr.mxu0 0.0
      %543 = vmatpush2.msra.mxu0 0.0
      %544 = vmatprep.subr.mxu0 0.0
      %545 = vmatpush2.msra.mxu0 0.0
      %546 = vmatprep.subr.mxu0 0.0
      %547 = vmatpush2.msra.mxu0 0.0
      %548 = vmatprep.subr.mxu0 0.0
      %549 = vmatpush2.msra.mxu0 0.0
      %550 = vmatprep.subr.mxu0 0.0
      %551 = vmatpush2.msra.mxu0 0.0
      %552 = vmatprep.subr.mxu0 0.0
      %553 = vmatpush2.msra.mxu0 0.0
      %554 = vmatprep.subr.mxu0 0.0
      %555 = vmatpush2.msra.mxu0 0.0
      %556 = vmatprep.mubr.f32.mxu0 0.0
      %557 = vmatmul.mubr.f32.gmra.mxu0 %v465
      %v558 = vpop.f32.mrf.mxu0
      %v559 = vadd.f32 0.0, %v558
      %v560 = vpop.f32.mrf.mxu0
      %561 = vmatprep.mubr.f32.mxu0 0.0
      %562 = vmatmul.mubr.f32.gmra.mxu0 %v468
      %v563 = vpop.f32.mrf.mxu0
      %v564 = vadd.f32 0.0, %v563
      %v565 = vpop.f32.mrf.mxu0
      %566 = vmatprep.mubr.f32.mxu0 0.0
      %567 = vmatmul.mubr.f32.gmra.mxu0 %v471
      %v568 = vpop.f32.mrf.mxu0
      %v569 = vadd.f32 0.0, %v568
      %v570 = vpop.f32.mrf.mxu0
      %571 = vmatprep.mubr.f32.mxu0 0.0
      %572 = vmatmul.mubr.f32.gmra.mxu0 %v474
      %v573 = vpop.f32.mrf.mxu0
      %v574 = vadd.f32 0.0, %v573
      %v575 = vpop.f32.mrf.mxu0
      %576 = vmatprep.mubr.f32.mxu0 0.0
      %577 = vmatmul.mubr.f32.gmra.mxu0 %v477
      %v578 = vpop.f32.mrf.mxu0
      %v579 = vadd.f32 0.0, %v578
      %v580 = vpop.f32.mrf.mxu0
      %581 = vmatprep.mubr.f32.mxu0 0.0
      %582 = vmatmul.mubr.f32.gmra.mxu0 %v480
      %v583 = vpop.f32.mrf.mxu0
      %v584 = vadd.f32 0.0, %v583
      %v585 = vpop.f32.mrf.mxu0
      %586 = vmatprep.mubr.f32.mxu0 0.0
      %587 = vmatmul.mubr.f32.gmra.mxu0 %v483
      %v588 = vpop.f32.mrf.mxu0
      %v589 = vadd.f32 0.0, %v588
      %v590 = vpop.f32.mrf.mxu0
      %591 = vmatprep.mubr.f32.mxu0 0.0
      %592 = vmatmul.mubr.f32.gmra.mxu0 %v486
      %v593 = vpop.f32.mrf.mxu0
      %v594 = vadd.f32 0.0, %v593
      %v595 = vpop.f32.mrf.mxu0
      %596 = vdwg.mxu0
      %v598 = vsel %vm463, %v174, 0
      %v601 = vsel %vm463, %v175, 0
      %v604 = vsel %vm463, %v176, 0
      %v607 = vsel %vm463, %v177, 0
      %v610 = vsel %vm463, %v178, 0
      %v613 = vsel %vm463, %v179, 0
      %v616 = vsel %vm463, %v180, 0
      %v619 = vsel %vm463, %v181, 0
      %v622 = vsel %vm488, %v461, 0
      %624 = vmatprep.subr.mxu0 0.0
      %625 = vmatpush1.msra.mxu0 0.0
      %626 = vmatprep.subr.mxu0 0.0
      %627 = vmatpush1.msra.mxu0 0.0
      %628 = vmatprep.subr.mxu0 0.0
      %629 = vmatpush1.msra.mxu0 0.0
      %630 = vmatprep.subr.mxu0 0.0
      %631 = vmatpush1.msra.mxu0 0.0
      %632 = vmatprep.subr.mxu0 0.0
      %633 = vmatpush1.msra.mxu0 0.0
      %634 = vmatprep.subr.mxu0 0.0
      %635 = vmatpush1.msra.mxu0 0.0
      %636 = vmatprep.subr.mxu0 0.0
      %637 = vmatpush1.msra.mxu0 0.0
      %638 = vmatprep.subr.mxu0 0.0
      %639 = vmatpush1.msra.mxu0 0.0
      %640 = vmatprep.subr.mxu0 0.0
      %641 = vmatpush1.msra.mxu0 0.0
      %642 = vmatprep.subr.mxu0 0.0
      %643 = vmatpush1.msra.mxu0 0.0
      %644 = vmatprep.subr.mxu0 0.0
      %645 = vmatpush1.msra.mxu0 0.0
      %646 = vmatprep.subr.mxu0 0.0
      %647 = vmatpush1.msra.mxu0 0.0
      %648 = vmatprep.subr.mxu0 0.0
      %649 = vmatpush1.msra.mxu0 0.0
      %650 = vmatprep.subr.mxu0 0.0
      %651 = vmatpush1.msra.mxu0 0.0
      %652 = vmatprep.subr.mxu0 0.0
      %653 = vmatpush1.msra.mxu0 0.0
      %654 = vmatprep.subr.mxu0 0.0
      %655 = vmatpush1.msra.mxu0 %v622
      %656 = vmatprep.subr.mxu0 0.0
      %657 = vmatpush2.msra.mxu0 0.0
      %658 = vmatprep.subr.mxu0 0.0
      %659 = vmatpush2.msra.mxu0 0.0
      %660 = vmatprep.subr.mxu0 0.0
      %661 = vmatpush2.msra.mxu0 0.0
      %662 = vmatprep.subr.mxu0 0.0
      %663 = vmatpush2.msra.mxu0 0.0
      %664 = vmatprep.subr.mxu0 0.0
      %665 = vmatpush2.msra.mxu0 0.0
      %666 = vmatprep.subr.mxu0 0.0
      %667 = vmatpush2.msra.mxu0 0.0
      %668 = vmatprep.subr.mxu0 0.0
      %669 = vmatpush2.msra.mxu0 0.0
      %670 = vmatprep.subr.mxu0 0.0
      %671 = vmatpush2.msra.mxu0 0.0
      %672 = vmatprep.subr.mxu0 0.0
      %673 = vmatpush2.msra.mxu0 0.0
      %674 = vmatprep.subr.mxu0 0.0
      %675 = vmatpush2.msra.mxu0 0.0
      %676 = vmatprep.subr.mxu0 0.0
      %677 = vmatpush2.msra.mxu0 0.0
      %678 = vmatprep.subr.mxu0 0.0
      %679 = vmatpush2.msra.mxu0 0.0
      %680 = vmatprep.subr.mxu0 0.0
      %681 = vmatpush2.msra.mxu0 0.0
      %682 = vmatprep.subr.mxu0 0.0
      %683 = vmatpush2.msra.mxu0 0.0
      %684 = vmatprep.subr.mxu0 0.0
      %685 = vmatpush2.msra.mxu0 0.0
      %686 = vmatprep.subr.mxu0 0.0
      %687 = vmatpush2.msra.mxu0 0.0
      %688 = vmatprep.mubr.f32.mxu0 0.0
      %689 = vmatmul.mubr.f32.gmra.mxu0 %v598
      %v690 = vpop.f32.mrf.mxu0
      %v691 = vadd.f32 %v559, %v690
      %v692 = vpop.f32.mrf.mxu0
      %693 = vmatprep.mubr.f32.mxu0 0.0
      %694 = vmatmul.mubr.f32.gmra.mxu0 %v601
      %v695 = vpop.f32.mrf.mxu0
      %v696 = vadd.f32 %v564, %v695
      %v697 = vpop.f32.mrf.mxu0
      %698 = vmatprep.mubr.f32.mxu0 0.0
      %699 = vmatmul.mubr.f32.gmra.mxu0 %v604
      %v700 = vpop.f32.mrf.mxu0
      %v701 = vadd.f32 %v569, %v700
      %v702 = vpop.f32.mrf.mxu0
      %703 = vmatprep.mubr.f32.mxu0 0.0
      %704 = vmatmul.mubr.f32.gmra.mxu0 %v607
      %v705 = vpop.f32.mrf.mxu0
      %v706 = vadd.f32 %v574, %v705
      %v707 = vpop.f32.mrf.mxu0
      %708 = vmatprep.mubr.f32.mxu0 0.0
      %709 = vmatmul.mubr.f32.gmra.mxu0 %v610
      %v710 = vpop.f32.mrf.mxu0
      %v711 = vadd.f32 %v579, %v710
      %v712 = vpop.f32.mrf.mxu0
      %713 = vmatprep.mubr.f32.mxu0 0.0
      %714 = vmatmul.mubr.f32.gmra.mxu0 %v613
      %v715 = vpop.f32.mrf.mxu0
      %v716 = vadd.f32 %v584, %v715
      %v717 = vpop.f32.mrf.mxu0
      %718 = vmatprep.mubr.f32.mxu0 0.0
      %719 = vmatmul.mubr.f32.gmra.mxu0 %v616
      %v720 = vpop.f32.mrf.mxu0
      %v721 = vadd.f32 %v589, %v720
      %v722 = vpop.f32.mrf.mxu0
      %723 = vmatprep.mubr.f32.mxu0 0.0
      %724 = vmatmul.mubr.f32.gmra.mxu0 %v619
      %v725 = vpop.f32.mrf.mxu0
      %v726 = vadd.f32 %v594, %v725
      %v727 = vpop.f32.mrf.mxu0
      %728 = vdwg.mxu0
      %v729 = vld [vmem:[%s2 + $0x68] sm:$0xf]
      %v731 = vsel %vm463, %v453, 0
      %v734 = vsel %vm463, %v454, 0
      %v737 = vsel %vm463, %v455, 0
      %v740 = vsel %vm463, %v456, 0
      %v743 = vsel %vm463, %v457, 0
      %v746 = vsel %vm463, %v458, 0
      %v749 = vsel %vm463, %v459, 0
      %v752 = vsel %vm463, %v460, 0
      %v755 = vsel %vm488, %v729, 0
      %757 = vmatprep.subr.mxu0 0.0
      %758 = vmatpush1.msra.mxu0 0.0
      %759 = vmatprep.subr.mxu0 0.0
      %760 = vmatpush1.msra.mxu0 0.0
      %761 = vmatprep.subr.mxu0 0.0
      %762 = vmatpush1.msra.mxu0 0.0
      %763 = vmatprep.subr.mxu0 0.0
      %764 = vmatpush1.msra.mxu0 0.0
      %765 = vmatprep.subr.mxu0 0.0
      %766 = vmatpush1.msra.mxu0 0.0
      %767 = vmatprep.subr.mxu0 0.0
      %768 = vmatpush1.msra.mxu0 0.0
      %769 = vmatprep.subr.mxu0 0.0
      %770 = vmatpush1.msra.mxu0 0.0
      %771 = vmatprep.subr.mxu0 0.0
      %772 = vmatpush1.msra.mxu0 0.0
      %773 = vmatprep.subr.mxu0 0.0
      %774 = vmatpush1.msra.mxu0 0.0
      %775 = vmatprep.subr.mxu0 0.0
      %776 = vmatpush1.msra.mxu0 0.0
      %777 = vmatprep.subr.mxu0 0.0
      %778 = vmatpush1.msra.mxu0 0.0
      %779 = vmatprep.subr.mxu0 0.0
      %780 = vmatpush1.msra.mxu0 0.0
      %781 = vmatprep.subr.mxu0 0.0
      %782 = vmatpush1.msra.mxu0 0.0
      %783 = vmatprep.subr.mxu0 0.0
      %784 = vmatpush1.msra.mxu0 0.0
      %785 = vmatprep.subr.mxu0 0.0
      %786 = vmatpush1.msra.mxu0 0.0
      %787 = vmatprep.subr.mxu0 0.0
      %788 = vmatpush1.msra.mxu0 %v755
      %789 = vmatprep.subr.mxu0 0.0
      %790 = vmatpush2.msra.mxu0 0.0
      %791 = vmatprep.subr.mxu0 0.0
      %792 = vmatpush2.msra.mxu0 0.0
      %793 = vmatprep.subr.mxu0 0.0
      %794 = vmatpush2.msra.mxu0 0.0
      %795 = vmatprep.subr.mxu0 0.0
      %796 = vmatpush2.msra.mxu0 0.0
      %797 = vmatprep.subr.mxu0 0.0
      %798 = vmatpush2.msra.mxu0 0.0
      %799 = vmatprep.subr.mxu0 0.0
      %800 = vmatpush2.msra.mxu0 0.0
      %801 = vmatprep.subr.mxu0 0.0
      %802 = vmatpush2.msra.mxu0 0.0
      %803 = vmatprep.subr.mxu0 0.0
      %804 = vmatpush2.msra.mxu0 0.0
      %805 = vmatprep.subr.mxu0 0.0
      %806 = vmatpush2.msra.mxu0 0.0
      %807 = vmatprep.subr.mxu0 0.0
      %808 = vmatpush2.msra.mxu0 0.0
      %809 = vmatprep.subr.mxu0 0.0
      %810 = vmatpush2.msra.mxu0 0.0
      %811 = vmatprep.subr.mxu0 0.0
      %812 = vmatpush2.msra.mxu0 0.0
      %813 = vmatprep.subr.mxu0 0.0
      %814 = vmatpush2.msra.mxu0 0.0
      %815 = vmatprep.subr.mxu0 0.0
      %816 = vmatpush2.msra.mxu0 0.0
      %817 = vmatprep.subr.mxu0 0.0
      %818 = vmatpush2.msra.mxu0 0.0
      %819 = vmatprep.subr.mxu0 0.0
      %820 = vmatpush2.msra.mxu0 0.0
      %821 = vmatprep.mubr.f32.mxu0 0.0
      %822 = vmatmul.mubr.f32.gmra.mxu0 %v731
      %v823 = vpop.f32.mrf.mxu0
      %v824 = vadd.f32 0.0, %v823
      %v825 = vpop.f32.mrf.mxu0
      %826 = vmatprep.mubr.f32.mxu0 0.0
      %827 = vmatmul.mubr.f32.gmra.mxu0 %v734
      %v828 = vpop.f32.mrf.mxu0
      %v829 = vadd.f32 0.0, %v828
      %v830 = vpop.f32.mrf.mxu0
      %831 = vmatprep.mubr.f32.mxu0 0.0
      %832 = vmatmul.mubr.f32.gmra.mxu0 %v737
      %v833 = vpop.f32.mrf.mxu0
      %v834 = vadd.f32 0.0, %v833
      %v835 = vpop.f32.mrf.mxu0
      %836 = vmatprep.mubr.f32.mxu0 0.0
      %837 = vmatmul.mubr.f32.gmra.mxu0 %v740
      %v838 = vpop.f32.mrf.mxu0
      %v839 = vadd.f32 0.0, %v838
      %v840 = vpop.f32.mrf.mxu0
      %841 = vmatprep.mubr.f32.mxu0 0.0
      %842 = vmatmul.mubr.f32.gmra.mxu0 %v743
      %v843 = vpop.f32.mrf.mxu0
      %v844 = vadd.f32 0.0, %v843
      %v845 = vpop.f32.mrf.mxu0
      %846 = vmatprep.mubr.f32.mxu0 0.0
      %847 = vmatmul.mubr.f32.gmra.mxu0 %v746
      %v848 = vpop.f32.mrf.mxu0
      %v849 = vadd.f32 0.0, %v848
      %v850 = vpop.f32.mrf.mxu0
      %851 = vmatprep.mubr.f32.mxu0 0.0
      %852 = vmatmul.mubr.f32.gmra.mxu0 %v749
      %v853 = vpop.f32.mrf.mxu0
      %v854 = vadd.f32 0.0, %v853
      %v855 = vpop.f32.mrf.mxu0
      %856 = vmatprep.mubr.f32.mxu0 0.0
      %857 = vmatmul.mubr.f32.gmra.mxu0 %v752
      %v858 = vpop.f32.mrf.mxu0
      %v859 = vadd.f32 0.0, %v858
      %v860 = vpop.f32.mrf.mxu0
      %861 = vdwg.mxu0
      %v862 = vadd.f32 %v691, %v824
      %v863 = vadd.f32 %v696, %v829
      %v864 = vadd.f32 %v701, %v834
      %v865 = vadd.f32 %v706, %v839
      %v866 = vadd.f32 %v711, %v844
      %v867 = vadd.f32 %v716, %v849
      %v868 = vadd.f32 %v721, %v854
      %v869 = vadd.f32 %v726, %v859
      %v870 = vmul.f32 %v862, %v182
      %v871 = vmul.f32 %v863, %v183
      %v872 = vmul.f32 %v864, %v184
      %v873 = vmul.f32 %v865, %v185
      %v874 = vmul.f32 %v866, %v186
      %v875 = vmul.f32 %v867, %v187
      %v876 = vmul.f32 %v868, %v188
      %v877 = vmul.f32 %v869, %v189
      %886 = vrot.lane.b32.xlu0 %v182, 32
      %v887 = vpop.permute.xlu0 %886
      %888 = vrot.lane.b32.xlu0 %v183, 32
      %v889 = vpop.permute.xlu0 %888
      %890 = vrot.lane.b32.xlu0 %v184, 32
      %v891 = vpop.permute.xlu0 %890
      %892 = vrot.lane.b32.xlu0 %v185, 32
      %v893 = vpop.permute.xlu0 %892
      %894 = vrot.lane.b32.xlu0 %v186, 32
      %v895 = vpop.permute.xlu0 %894
      %896 = vrot.lane.b32.xlu0 %v187, 32
      %v897 = vpop.permute.xlu0 %896
      %898 = vrot.lane.b32.xlu0 %v188, 32
      %v899 = vpop.permute.xlu0 %898
      %900 = vrot.lane.b32.xlu0 %v189, 32
      %v901 = vpop.permute.xlu0 %900
      %vm910 = vcmask 785408
      %v912 = vsel %vm910, %v870, 0
      %v915 = vsel %vm910, %v871, 0
      %v918 = vsel %vm910, %v872, 0
      %v921 = vsel %vm910, %v873, 0
      %v924 = vsel %vm910, %v874, 0
      %v927 = vsel %vm910, %v875, 0
      %v930 = vsel %vm910, %v876, 0
      %v933 = vsel %vm910, %v877, 0
      %935 = vmatprep.subr.mxu0 0.0
      %936 = vmatpush1.msra.mxu0 0.0
      %937 = vmatprep.subr.mxu0 0.0
      %938 = vmatpush1.msra.mxu0 0.0
      %939 = vmatprep.subr.mxu0 0.0
      %940 = vmatpush1.msra.mxu0 0.0
      %941 = vmatprep.subr.mxu0 0.0
      %942 = vmatpush1.msra.mxu0 0.0
      %943 = vmatprep.subr.mxu0 0.0
      %944 = vmatpush1.msra.mxu0 %v209
      %945 = vmatprep.subr.mxu0 0.0
      %946 = vmatpush1.msra.mxu0 %v208
      %947 = vmatprep.subr.mxu0 0.0
      %948 = vmatpush1.msra.mxu0 %v207
      %949 = vmatprep.subr.mxu0 0.0
      %950 = vmatpush1.msra.mxu0 %v206
      %951 = vmatprep.subr.mxu0 0.0
      %952 = vmatpush1.msra.mxu0 %v205
      %953 = vmatprep.subr.mxu0 0.0
      %954 = vmatpush1.msra.mxu0 %v204
      %955 = vmatprep.subr.mxu0 0.0
      %956 = vmatpush1.msra.mxu0 %v203
      %957 = vmatprep.subr.mxu0 0.0
      %958 = vmatpush1.msra.mxu0 %v202
      %959 = vmatprep.subr.mxu0 0.0
      %960 = vmatpush1.msra.mxu0 %v201
      %961 = vmatprep.subr.mxu0 0.0
      %962 = vmatpush1.msra.mxu0 %v200
      %963 = vmatprep.subr.mxu0 0.0
      %964 = vmatpush1.msra.mxu0 %v199
      %965 = vmatprep.subr.mxu0 0.0
      %966 = vmatpush1.msra.mxu0 %v198
      %967 = vmatprep.subr.mxu0 0.0
      %968 = vmatpush2.msra.mxu0 0.0
      %969 = vmatprep.subr.mxu0 0.0
      %970 = vmatpush2.msra.mxu0 0.0
      %971 = vmatprep.subr.mxu0 0.0
      %972 = vmatpush2.msra.mxu0 0.0
      %973 = vmatprep.subr.mxu0 0.0
      %974 = vmatpush2.msra.mxu0 0.0
      %975 = vmatprep.subr.mxu0 0.0
      %976 = vmatpush2.msra.mxu0 0.0
      %977 = vmatprep.subr.mxu0 0.0
      %978 = vmatpush2.msra.mxu0 0.0
      %979 = vmatprep.subr.mxu0 0.0
      %980 = vmatpush2.msra.mxu0 0.0
      %981 = vmatprep.subr.mxu0 0.0
      %982 = vmatpush2.msra.mxu0 0.0
      %983 = vmatprep.subr.mxu0 0.0
      %984 = vmatpush2.msra.mxu0 0.0
      %985 = vmatprep.subr.mxu0 0.0
      %986 = vmatpush2.msra.mxu0 0.0
      %987 = vmatprep.subr.mxu0 0.0
      %988 = vmatpush2.msra.mxu0 0.0
      %989 = vmatprep.subr.mxu0 0.0
      %990 = vmatpush2.msra.mxu0 0.0
      %991 = vmatprep.subr.mxu0 0.0
      %992 = vmatpush2.msra.mxu0 0.0
      %993 = vmatprep.subr.mxu0 0.0
      %994 = vmatpush2.msra.mxu0 0.0
      %995 = vmatprep.subr.mxu0 0.0
      %996 = vmatpush2.msra.mxu0 0.0
      %997 = vmatprep.subr.mxu0 0.0
      %998 = vmatpush2.msra.mxu0 0.0
      %999 = vmatprep.mubr.f32.mxu0 0.0
      %1000 = vmatmul.mubr.f32.gmra.mxu0 %v912
      %v1001 = vpop.f32.mrf.mxu0
      %v1002 = vadd.f32 %v887, %v1001
      %v1003 = vpop.f32.mrf.mxu0
      %1004 = vmatprep.mubr.f32.mxu0 0.0
      %1005 = vmatmul.mubr.f32.gmra.mxu0 %v915
      %v1006 = vpop.f32.mrf.mxu0
      %v1007 = vadd.f32 %v889, %v1006
      %v1008 = vpop.f32.mrf.mxu0
      %1009 = vmatprep.mubr.f32.mxu0 0.0
      %1010 = vmatmul.mubr.f32.gmra.mxu0 %v918
      %v1011 = vpop.f32.mrf.mxu0
      %v1012 = vadd.f32 %v891, %v1011
      %v1013 = vpop.f32.mrf.mxu0
      %1014 = vmatprep.mubr.f32.mxu0 0.0
      %1015 = vmatmul.mubr.f32.gmra.mxu0 %v921
      %v1016 = vpop.f32.mrf.mxu0
      %v1017 = vadd.f32 %v893, %v1016
      %v1018 = vpop.f32.mrf.mxu0
      %1019 = vmatprep.mubr.f32.mxu0 0.0
      %1020 = vmatmul.mubr.f32.gmra.mxu0 %v924
      %v1021 = vpop.f32.mrf.mxu0
      %v1022 = vadd.f32 %v895, %v1021
      %v1023 = vpop.f32.mrf.mxu0
      %1024 = vmatprep.mubr.f32.mxu0 0.0
      %1025 = vmatmul.mubr.f32.gmra.mxu0 %v927
      %v1026 = vpop.f32.mrf.mxu0
      %v1027 = vadd.f32 %v897, %v1026
      %v1028 = vpop.f32.mrf.mxu0
      %1029 = vmatprep.mubr.f32.mxu0 0.0
      %1030 = vmatmul.mubr.f32.gmra.mxu0 %v930
      %v1031 = vpop.f32.mrf.mxu0
      %v1032 = vadd.f32 %v899, %v1031
      %v1033 = vpop.f32.mrf.mxu0
      %1034 = vmatprep.mubr.f32.mxu0 0.0
      %1035 = vmatmul.mubr.f32.gmra.mxu0 %v933
      %v1036 = vpop.f32.mrf.mxu0
      %v1037 = vadd.f32 %v901, %v1036
      %v1038 = vpop.f32.mrf.mxu0
      %1039 = vdwg.mxu0
      %vm1040 = vcmask 64512
      %1041 = vst.msk [vmem:[%s172] sm:$0xff] %vm1040, %v1002
      %1042 = vst.msk [vmem:[%s172 + $0x8] sm:$0xff] %vm1040, %v1007
      %1043 = vst.msk [vmem:[%s172 + $0x10] sm:$0xff] %vm1040, %v1012
      %1044 = vst.msk [vmem:[%s172 + $0x18] sm:$0xff] %vm1040, %v1017
      %1045 = vst.msk [vmem:[%s172 + $0x20] sm:$0xff] %vm1040, %v1022
      %1046 = vst.msk [vmem:[%s172 + $0x28] sm:$0xff] %vm1040, %v1027
      %1047 = vst.msk [vmem:[%s172 + $0x30] sm:$0xff] %vm1040, %v1032
      %1048 = vst.msk [vmem:[%s172 + $0x38] sm:$0xff] %vm1040, %v1037
      %s1049 = smul.u32 8, %s14
      %p1050 = scmp.lt.s32.totalorder %s1049, 15
      %s1051 = scalar_select %p1050, %s1049, 15
      %s1052 = smul.addr %s1051, 8
      %s1053 = scalar_lea.vmem %s3, %s1052
      // Predicated region
      $region33: #{avwgcn_forward.3} parent=31 // pred_check
        %p1054 = pneg %p100
      $region34: #{avwgcn_forward.3} parent=31 // pred_check_branch
        %1056 = sbr.rel (%p1054) target = $region36
      $region35: #{avwgcn_forward.3} parent=31 // pred_region
        %s1057 = smul.u32 8, %s14
      $region36: #{avwgcn_forward.3} parent=31 // pred_fallthru
        _
    $region32: #{avwgcn_forward.3} parent=5 // pred_fallthru
      _
    %p1058 = scmp.le.s32.totalorder 2, %s9
    // Predicated region
    $region37: #{avwgcn_forward.3} parent=5 // pred_check
      %p1059 = pneg %p1058
    $region38: #{avwgcn_forward.3} parent=5 // pred_check_branch
      %1061 = sbr.rel (%p1059) target = $region40
    $region39: #{avwgcn_forward.3} parent=5 // pred_region
      %s1062 = ssub.s32 %s9, 2
      // Predicated region
      $region41: #{avwgcn_forward.3} parent=39 // pred_check
        %p1063 = pneg %p106
      $region42: #{avwgcn_forward.3} parent=39 // pred_check_branch
        %1065 = sbr.rel (%p1063) target = $region44
      $region43: #{avwgcn_forward.3} parent=39 // pred_region
        %s1066 = smul.u32 8, %s15
        %p1067 = scmp.lt.s32.totalorder %s1066, 15
        %s1068 = scalar_select %p1067, %s1066, 15
        %s1069 = smul.addr %s1068, 8
        %s1070 = scalar_lea.vmem %s3, %s1069
      $region44: #{avwgcn_forward.3} parent=39 // pred_fallthru
        _
    $region40: #{avwgcn_forward.3} parent=5 // pred_fallthru
      _
  $region6: #{avwgcn_forward.3} parent=0 // loop_footer
    %s13 = sadd.s32 1, %s9
  $region7: #{avwgcn_forward.3} parent=0 // loop_footer_branch
    %8 = sbr.rel target = $region3
  $region8: #{avwgcn_forward.3} parent=0 // loop_exit
    _

</llo_original>
